<compile_context>
chip_gen: v5e
topology: v5e:2x2
jax: 0.10.0
libtpu: 0.0.40
codegen_flags: <defaults>
</compile_context>

<pallas_src>
import jax
import jax.numpy as jnp
from jax.experimental import pallas as pl
from jax.experimental.pallas import tpu as pltpu


def _sigmoid_mul_kernel(g_ref, x_ref, o_ref):
    # g_ref: (block_nc, 1)   in VMEM
    # x_ref: (block_nc, HW)  in VMEM
    gate = jax.nn.sigmoid(g_ref[...].astype(jnp.float32))      # EUP sigmoid in f32
    prod = gate * x_ref[...].astype(jnp.float32)               # lane-broadcast mul in f32
    o_ref[...] = prod.astype(o_ref.dtype)                      # single downcast at the end


def _sublane_align(itemsize):
    # f32 -> 8, bf16 -> 16, int8/fp8 -> 32 (sub-32-bit dtypes pack along sublanes).
    return max(8, 32 // max(1, itemsize))


def _pick_block_nc(nc, hw, itemsize, target_bytes=2 << 20):
    """Block rows along N*C.

    Sublane-aligned, an exact divisor of nc when possible, at least 2 grid
    steps (so v7x can shard one step per TensorCore and the pipeline keeps
    DMA/compute overlap), and at most ~target_bytes of x per tile.
    """
    align = _sublane_align(itemsize)
    if nc <= 2 * align:
        return nc                                    # single full block
    max_rows = max(align, target_bytes // max(1, hw * itemsize))
    cap = min(max_rows, nc // 2)                     # force >= 2 steps
    cap = max(align, (cap // align) * align)
    best = None
    for b in range(align, cap + 1, align):
        if nc % b == 0:
            best = b                                 # largest aligned exact divisor <= cap
    if best is not None:
        return best
    # No exact divisor: partial last block.  Pallas masks the OOB writes so
    # results stay correct; OOB reads only feed a discarded sigmoid/mul.
    return cap


def sigmoid_mul(gate_nc11, x_nchw):
    """sigmoid(gate) * x with broadcasting, matching torch semantics."""
    N, C, H, W = x_nchw.shape
    assert gate_nc11.shape == (N, C, 1, 1)

    NC, HW = N * C, H * W
    x2d = x_nchw.reshape(NC, HW)
    g2d = gate_nc11.reshape(NC, 1)

    itemsize = jnp.dtype(x_nchw.dtype).itemsize
    block_nc = _pick_block_nc(NC, HW, itemsize)      # e.g. 480 for NC=960 -> 2 grid steps
    grid = (pl.cdiv(NC, block_nc),)

    out2d = pl.pallas_call(
        _sigmoid_mul_kernel,
        out_shape=jax.ShapeDtypeStruct((NC, HW), x_nchw.dtype),
        grid=grid,
        in_specs=[
            pl.BlockSpec((block_nc, 1), lambda i: (i, 0)),
            pl.BlockSpec((block_nc, HW), lambda i: (i, 0)),
        ],
        out_specs=pl.BlockSpec((block_nc, HW), lambda i: (i, 0)),
        compiler_params=pltpu.CompilerParams(
            dimension_semantics=("parallel",),
        ),
    )(g2d, x2d)

    return out2d.reshape(N, C, H, W)


if __name__ == "__main__":
    key = jax.random.PRNGKey(0)
    k1, k2 = jax.random.split(key)

    # Shapes from the module's forward: x345=(1,960,1,1), x341=(1,960,14,14)
    N, C, H, W = 1, 960, 14, 14
    x341 = jax.random.normal(k1, (N, C, H, W), dtype=jnp.float32)
    x345 = jax.random.normal(k2, (N, C, 1, 1), dtype=jnp.float32)

    out = sigmoid_mul(x345, x341)
    jax.block_until_ready(out)

    # Reference check in plain JAX (torch: sigmoid(x345) * x341).
    ref = jax.nn.sigmoid(x345) * x341
    assert out.shape == (N, C, H, W)
    assert jnp.allclose(out, ref, atol=1e-6, rtol=1e-6)

    print("KERNEL_OK")
</pallas_src>

<mosaic_0001>
module attributes {stable_mosaic.version = 11 : i64} {
  func.func @_sigmoid_mul_kernel(%arg0: i32, %arg1: memref<480x1xf32, #tpu.memory_space<vmem>>, %arg2: memref<480x196xf32, #tpu.memory_space<vmem>>, %arg3: memref<480x196xf32, #tpu.memory_space<vmem>>) attributes {dimension_semantics = [#tpu.dimension_semantics<parallel>], iteration_bounds = array<i64: 2>, scalar_prefetch = 0 : i64, scratch_operands = 0 : i64, tpu.core_type = #tpu.core_type<tc>, window_params = [{transform_indices = @transform_0, window_bounds = array<i64: 480, 1>}, {transform_indices = @transform_1, window_bounds = array<i64: 480, 196>}, {transform_indices = @transform_2, window_bounds = array<i64: 480, 196>}]} {
    %c0 = arith.constant 0 : index
    %c0_0 = arith.constant 0 : index
    %0 = vector.load %arg1[%c0, %c0_0] : memref<480x1xf32, #tpu.memory_space<vmem>>, vector<480x1xf32>
    %1 = arith.negf %0 : vector<480x1xf32>
    %2 = math.exp %1 : vector<480x1xf32>
    %cst = arith.constant 1.000000e+00 : f32
    %3 = vector.broadcast %cst : f32 to vector<480x1xf32>
    %4 = arith.addf %3, %2 : vector<480x1xf32>
    %5 = arith.divf %3, %4 : vector<480x1xf32>
    %c0_1 = arith.constant 0 : index
    %c0_2 = arith.constant 0 : index
    %6 = vector.load %arg2[%c0_1, %c0_2] : memref<480x196xf32, #tpu.memory_space<vmem>>, vector<480x196xf32>
    %7 = vector.broadcast %5 : vector<480x1xf32> to vector<480x196xf32>
    %8 = arith.mulf %7, %6 : vector<480x196xf32>
    %c0_3 = arith.constant 0 : index
    %c0_4 = arith.constant 0 : index
    %9 = vector.load %arg3[%c0_3, %c0_4] : memref<480x196xf32, #tpu.memory_space<vmem>>, vector<480x196xf32>
    tpu.vector_store %arg3[%c0_3, %c0_4], %8 {strides = array<i32>} : memref<480x196xf32, #tpu.memory_space<vmem>>, vector<480x196xf32>,
    return
  }
  func.func @transform_0(%arg0: i32) -> (i32, i32) {
    %c0_i32 = arith.constant 0 : i32
    %c0_i32_0 = arith.constant 0 : i32
    return %arg0, %c0_i32 : i32, i32
  }
  func.func @transform_1(%arg0: i32) -> (i32, i32) {
    %c0_i32 = arith.constant 0 : i32
    %c0_i32_0 = arith.constant 0 : i32
    return %arg0, %c0_i32 : i32, i32
  }
  func.func @transform_2(%arg0: i32) -> (i32, i32) {
    %c0_i32 = arith.constant 0 : i32
    %c0_i32_0 = arith.constant 0 : i32
    return %arg0, %c0_i32 : i32, i32
  }
}

</mosaic_0001>

<llo_original>
// kernel: tpu_custom_call.1
$region0: #{tpu_custom_call.1}
  #allocation0 [shape = 'u32[]', space=smem, size = 0x4, offset = 0x4, fixed_abs, tag = 'smem constant byte address 0x4 - core index']
  #allocation1 [shape = 'u32[72,128]{1,0:T(1,128)}', space=vmem, size = 0x9000, scoped, tag = 'internal scratch']
  %s0 = inlined_call_operand.vmem [shape: f32[960,1], index: 0, kind: input, shape index: {}]
  %s1 = inlined_call_operand.vmem [shape: f32[960,196], index: 1, kind: input, shape index: {}]
  %s2 = inlined_call_operand.vmem [shape: f32[960,196], index: 2, kind: output, shape index: {}]
  %s3 = sld [smem:[#allocation0]]
  $region41: #{tpu_custom_call.1} parent=0
    _
  %s5 = ssub.s32 1, %s3
  %s6 = scalar_select 0, %s5, %s3
  loop: start=0, step=1, limit=4
  $region2: #{tpu_custom_call.1} parent=0 // loop_pre_header
    _
  $region3: #{tpu_custom_call.1} parent=0 // loop_header
    %s8 = sphi 0, %s12
    %p9 = scmp.ge.s32.totalorder %s8, 4
    %s18 = sphi 0, %s20
    %s21 = sphi 0, %s18
    %s22 = sphi 0, %s21
    %s38 = sphi 0, %s22
    %s44 = sphi 0, %s46
    %s47 = sphi 0, %s44
    %s48 = sphi 0, %s47
    %s64 = sphi 0, %s48
    %s70 = sphi 0, %s72
    %s73 = sphi 0, %s70
    %s74 = sphi 0, %s73
    %s90 = sphi 0, %s74
  $region4: #{tpu_custom_call.1} parent=0 // loop_header_branch
    %11 = sbr.rel (%p9) target = $region8
  $region5: #{tpu_custom_call.1} parent=0 // loop_body
    %s13 = ssub.s32 %s8, 1
    %s14 = ssub.s32 %s8, 2
    %s15 = sadd.s32 %s8, 1
    %s16 = ssub.s32 %s8, %s15
    %p17 = scmp.eq.s32.totalorder %s16, 0
    %s19 = sadd.s32 %s18, 1
    %s20 = scalar_select %p17, %s18, %s19
    %p23 = pneg %p17
    %p24 = scmp.eq.s32.totalorder %s8, 1
    %p25 = por %p23, %p24
    %p26 = scmp.ne.s32.totalorder %s18, %s21
    %p27 = scmp.eq.s32.totalorder %s8, 0
    %p28 = por %p26, %p27
    %p29 = scmp.ne.s32.totalorder %s18, %s21
    %p30 = scmp.eq.s32.totalorder %s13, 1
    %p31 = por %p29, %p30
    %p32 = scmp.ne.s32.totalorder %s21, %s22
    %p33 = scmp.eq.s32.totalorder %s13, 0
    %p34 = por %p32, %p33
    %p35 = scmp.ne.s32.totalorder %s21, %s22
    %p36 = scmp.eq.s32.totalorder %s14, 1
    %p37 = por %p35, %p36
    %p39 = scmp.ne.s32.totalorder %s22, %s38
    %p40 = scmp.eq.s32.totalorder %s14, 0
    %p41 = por %p39, %p40
    %s42 = ssub.s32 %s8, %s15
    %p43 = scmp.eq.s32.totalorder %s42, 0
    %s45 = sadd.s32 %s44, 1
    %s46 = scalar_select %p43, %s44, %s45
    %p49 = pneg %p43
    %p50 = scmp.eq.s32.totalorder %s8, 1
    %p51 = por %p49, %p50
    %p52 = scmp.ne.s32.totalorder %s44, %s47
    %p53 = scmp.eq.s32.totalorder %s8, 0
    %p54 = por %p52, %p53
    %p55 = scmp.ne.s32.totalorder %s44, %s47
    %p56 = scmp.eq.s32.totalorder %s13, 1
    %p57 = por %p55, %p56
    %p58 = scmp.ne.s32.totalorder %s47, %s48
    %p59 = scmp.eq.s32.totalorder %s13, 0
    %p60 = por %p58, %p59
    %p61 = scmp.ne.s32.totalorder %s47, %s48
    %p62 = scmp.eq.s32.totalorder %s14, 1
    %p63 = por %p61, %p62
    %p65 = scmp.ne.s32.totalorder %s48, %s64
    %p66 = scmp.eq.s32.totalorder %s14, 0
    %p67 = por %p65, %p66
    %s68 = ssub.s32 %s8, %s15
    %p69 = scmp.eq.s32.totalorder %s68, 0
    %s71 = sadd.s32 %s70, 1
    %s72 = scalar_select %p69, %s70, %s71
    %p75 = pneg %p69
    %p76 = scmp.eq.s32.totalorder %s8, 1
    %p77 = por %p75, %p76
    %p78 = scmp.ne.s32.totalorder %s70, %s73
    %p79 = scmp.eq.s32.totalorder %s8, 0
    %p80 = por %p78, %p79
    %p81 = scmp.ne.s32.totalorder %s70, %s73
    %p82 = scmp.eq.s32.totalorder %s13, 1
    %p83 = por %p81, %p82
    %p84 = scmp.ne.s32.totalorder %s73, %s74
    %p85 = scmp.eq.s32.totalorder %s13, 0
    %p86 = por %p84, %p85
    %p87 = scmp.ne.s32.totalorder %s73, %s74
    %p88 = scmp.eq.s32.totalorder %s14, 1
    %p89 = por %p87, %p88
    %p91 = scmp.ne.s32.totalorder %s74, %s90
    %p92 = scmp.eq.s32.totalorder %s14, 0
    %p93 = por %p91, %p92
    %p94 = scmp.le.s32.totalorder 1, %s8
    %p95 = scmp.lt.s32.totalorder %s8, 3
    %p96 = pnand %p94, %p95
    %p97 = pneg %p96
    // Predicated region
    $region9: #{tpu_custom_call.1} parent=5 // pred_check
      _
    $region10: #{tpu_custom_call.1} parent=5 // pred_check_branch
      %99 = sbr.rel (%p96) target = $region12
    $region11: #{tpu_custom_call.1} parent=5 // pred_region
      %s100 = ssub.s32 %s8, 1
    $region12: #{tpu_custom_call.1} parent=5 // pred_fallthru
      _
    %p101 = scmp.lt.s32.totalorder %s8, 2
    // Predicated region
    $region13: #{tpu_custom_call.1} parent=5 // pred_check
      %p102 = pneg %p101
    $region14: #{tpu_custom_call.1} parent=5 // pred_check_branch
      %104 = sbr.rel (%p102) target = $region16
    $region15: #{tpu_custom_call.1} parent=5 // pred_region
      // Predicated region
      $region17: #{tpu_custom_call.1} parent=15 // pred_check
        %p105 = pneg %p28
      $region18: #{tpu_custom_call.1} parent=15 // pred_check_branch
        %107 = sbr.rel (%p105) target = $region20
      $region19: #{tpu_custom_call.1} parent=15 // pred_region
        %s108 = smul.u32 60, %s8
        %p109 = scmp.lt.s32.totalorder %s108, 119
        %s110 = scalar_select %p109, %s108, 119
        %s111 = smul.addr %s110, 8
        %s112 = scalar_lea.vmem %s0, %s111
        %s113 = smul.u32 60, %s8
      $region20: #{tpu_custom_call.1} parent=15 // pred_fallthru
        _
      // Predicated region
      $region21: #{tpu_custom_call.1} parent=15 // pred_check
        %p114 = pneg %p54
      $region22: #{tpu_custom_call.1} parent=15 // pred_check_branch
        %116 = sbr.rel (%p114) target = $region24
      $region23: #{tpu_custom_call.1} parent=15 // pred_region
        %s117 = smul.u32 60, %s8
        %p118 = scmp.lt.s32.totalorder %s117, 119
        %s119 = scalar_select %p118, %s117, 119
        %s120 = smul.addr %s119, 2
        %s121 = smul.addr %s120, 8
        %s122 = scalar_lea.vmem %s1, %s121
        %s123 = smul.u32 60, %s8
      $region24: #{tpu_custom_call.1} parent=15 // pred_fallthru
        _
    $region16: #{tpu_custom_call.1} parent=5 // pred_fallthru
      _
    %p124 = scmp.le.s32.totalorder 1, %s8
    %p125 = scmp.lt.s32.totalorder %s8, 3
    %p126 = pnand %p124, %p125
    %p127 = pneg %p126
    // Predicated region
    $region25: #{tpu_custom_call.1} parent=5 // pred_check
      _
    $region26: #{tpu_custom_call.1} parent=5 // pred_check_branch
      %129 = sbr.rel (%p126) target = $region28
    $region27: #{tpu_custom_call.1} parent=5 // pred_region
      %s130 = ssub.s32 %s8, 1
      %s131 = smul.u32 60, %s13
      %p132 = scmp.lt.s32.totalorder %s131, 119
      %s133 = scalar_select %p132, %s131, 119
      %s134 = smul.addr %s133, 8
      %s135 = scalar_lea.vmem %s0, %s134
      %p136 = pneg %p34
      %p137 = pneg %p31
      %s138 = smul.u32 60, %s13
      %p139 = scmp.lt.s32.totalorder %s138, 119
      %s140 = scalar_select %p139, %s138, 119
      %s141 = smul.addr %s140, 2
      %s142 = smul.addr %s141, 8
      %s143 = scalar_lea.vmem %s1, %s142
      %p144 = pneg %p60
      %p145 = pneg %p57
      %p146 = pneg %p86
      %p147 = pneg %p83
      %s148 = smul.u32 60, %s13
      %p149 = scmp.lt.s32.totalorder %s148, 119
      %s150 = scalar_select %p149, %s148, 119
      %s151 = smul.addr %s150, 2
      %s152 = smul.addr %s151, 8
      %s153 = scalar_lea.vmem %s2, %s152
      %s154 = smul.u32 60, %s13
      %p155 = scmp.lt.s32.totalorder %s154, 119
      %s156 = scalar_select %p155, %s154, 119
      %s157 = smul.addr %s156, 8
      %s158 = scalar_lea.vmem %s0, %s157
      %s159 = smul.u32 60, %s13
      %s160 = smul.u32 60, %s13
      %p161 = scmp.lt.s32.totalorder %s160, 119
      %s162 = scalar_select %p161, %s160, 119
      %s163 = smul.addr %s162, 2
      %s164 = smul.addr %s163, 8
      %s165 = scalar_lea.vmem %s1, %s164
      %s166 = smul.u32 60, %s13
      %s167 = smul.u32 60, %s13
      %p168 = scmp.lt.s32.totalorder %s167, 119
      %s169 = scalar_select %p168, %s167, 119
      %s170 = smul.addr %s169, 2
      %s171 = smul.addr %s170, 8
      %s172 = scalar_lea.vmem %s2, %s171
      %s173 = smul.u32 60, %s13
      %v174 = vld [vmem:[%s158] sm:$0xff]
      %v175 = vld [vmem:[%s158 + $0x8] sm:$0xff]
      %v176 = vld [vmem:[%s158 + $0x10] sm:$0xff]
      %v177 = vld [vmem:[%s158 + $0x18] sm:$0xff]
      %v178 = vld [vmem:[%s158 + $0x20] sm:$0xff]
      %v179 = vld [vmem:[%s158 + $0x28] sm:$0xff]
      %v180 = vld [vmem:[%s158 + $0x30] sm:$0xff]
      %v181 = vld [vmem:[%s158 + $0x38] sm:$0xff]
      %v182 = vld [vmem:[%s158 + $0x40] sm:$0xff]
      %v183 = vld [vmem:[%s158 + $0x48] sm:$0xff]
      %v184 = vld [vmem:[%s158 + $0x50] sm:$0xff]
      %v185 = vld [vmem:[%s158 + $0x58] sm:$0xff]
      %v186 = vld [vmem:[%s158 + $0x60] sm:$0xff]
      %v187 = vld [vmem:[%s158 + $0x68] sm:$0xff]
      %v188 = vld [vmem:[%s158 + $0x70] sm:$0xff]
      %v189 = vld [vmem:[%s158 + $0x78] sm:$0xff]
      %v190 = vld [vmem:[%s158 + $0x80] sm:$0xff]
      %v191 = vld [vmem:[%s158 + $0x88] sm:$0xff]
      %v192 = vld [vmem:[%s158 + $0x90] sm:$0xff]
      %v193 = vld [vmem:[%s158 + $0x98] sm:$0xff]
      %v194 = vld [vmem:[%s158 + $0xa0] sm:$0xff]
      %v195 = vld [vmem:[%s158 + $0xa8] sm:$0xff]
      %v196 = vld [vmem:[%s158 + $0xb0] sm:$0xff]
      %v197 = vld [vmem:[%s158 + $0xb8] sm:$0xff]
      %v198 = vld [vmem:[%s158 + $0xc0] sm:$0xff]
      %v199 = vld [vmem:[%s158 + $0xc8] sm:$0xff]
      %v200 = vld [vmem:[%s158 + $0xd0] sm:$0xff]
      %v201 = vld [vmem:[%s158 + $0xd8] sm:$0xff]
      %v202 = vld [vmem:[%s158 + $0xe0] sm:$0xff]
      %v203 = vld [vmem:[%s158 + $0xe8] sm:$0xff]
      %v204 = vld [vmem:[%s158 + $0xf0] sm:$0xff]
      %v205 = vld [vmem:[%s158 + $0xf8] sm:$0xff]
      %v206 = vld [vmem:[%s158 + $0x100] sm:$0xff]
      %v207 = vld [vmem:[%s158 + $0x108] sm:$0xff]
      %v208 = vld [vmem:[%s158 + $0x110] sm:$0xff]
      %v209 = vld [vmem:[%s158 + $0x118] sm:$0xff]
      %v210 = vld [vmem:[%s158 + $0x120] sm:$0xff]
      %v211 = vld [vmem:[%s158 + $0x128] sm:$0xff]
      %v212 = vld [vmem:[%s158 + $0x130] sm:$0xff]
      %v213 = vld [vmem:[%s158 + $0x138] sm:$0xff]
      %v214 = vld [vmem:[%s158 + $0x140] sm:$0xff]
      %v215 = vld [vmem:[%s158 + $0x148] sm:$0xff]
      %v216 = vld [vmem:[%s158 + $0x150] sm:$0xff]
      %v217 = vld [vmem:[%s158 + $0x158] sm:$0xff]
      %v218 = vld [vmem:[%s158 + $0x160] sm:$0xff]
      %v219 = vld [vmem:[%s158 + $0x168] sm:$0xff]
      %v220 = vld [vmem:[%s158 + $0x170] sm:$0xff]
      %v221 = vld [vmem:[%s158 + $0x178] sm:$0xff]
      %v222 = vld [vmem:[%s158 + $0x180] sm:$0xff]
      %v223 = vld [vmem:[%s158 + $0x188] sm:$0xff]
      %v224 = vld [vmem:[%s158 + $0x190] sm:$0xff]
      %v225 = vld [vmem:[%s158 + $0x198] sm:$0xff]
      %v226 = vld [vmem:[%s158 + $0x1a0] sm:$0xff]
      %v227 = vld [vmem:[%s158 + $0x1a8] sm:$0xff]
      %v228 = vld [vmem:[%s158 + $0x1b0] sm:$0xff]
      %v229 = vld [vmem:[%s158 + $0x1b8] sm:$0xff]
      %v230 = vld [vmem:[%s158 + $0x1c0] sm:$0xff]
      %v231 = vld [vmem:[%s158 + $0x1c8] sm:$0xff]
      %v232 = vld [vmem:[%s158 + $0x1d0] sm:$0xff]
      %v233 = vld [vmem:[%s158 + $0x1d8] sm:$0xff]
      %v234 = vxor.u32 %v174, 2147483648
      %v235 = vxor.u32 %v175, 2147483648
      %v236 = vxor.u32 %v176, 2147483648
      %v237 = vxor.u32 %v177, 2147483648
      %v238 = vxor.u32 %v178, 2147483648
      %v239 = vxor.u32 %v179, 2147483648
      %v240 = vxor.u32 %v180, 2147483648
      %v241 = vxor.u32 %v181, 2147483648
      %v242 = vxor.u32 %v182, 2147483648
      %v243 = vxor.u32 %v183, 2147483648
      %v244 = vxor.u32 %v184, 2147483648
      %v245 = vxor.u32 %v185, 2147483648
      %v246 = vxor.u32 %v186, 2147483648
      %v247 = vxor.u32 %v187, 2147483648
      %v248 = vxor.u32 %v188, 2147483648
      %v249 = vxor.u32 %v189, 2147483648
      %v250 = vxor.u32 %v190, 2147483648
      %v251 = vxor.u32 %v191, 2147483648
      %v252 = vxor.u32 %v192, 2147483648
      %v253 = vxor.u32 %v193, 2147483648
      %v254 = vxor.u32 %v194, 2147483648
      %v255 = vxor.u32 %v195, 2147483648
      %v256 = vxor.u32 %v196, 2147483648
      %v257 = vxor.u32 %v197, 2147483648
      %v258 = vxor.u32 %v198, 2147483648
      %v259 = vxor.u32 %v199, 2147483648
      %v260 = vxor.u32 %v200, 2147483648
      %v261 = vxor.u32 %v201, 2147483648
      %v262 = vxor.u32 %v202, 2147483648
      %v263 = vxor.u32 %v203, 2147483648
      %v264 = vxor.u32 %v204, 2147483648
      %v265 = vxor.u32 %v205, 2147483648
      %v266 = vxor.u32 %v206, 2147483648
      %v267 = vxor.u32 %v207, 2147483648
      %v268 = vxor.u32 %v208, 2147483648
      %v269 = vxor.u32 %v209, 2147483648
      %v270 = vxor.u32 %v210, 2147483648
      %v271 = vxor.u32 %v211, 2147483648
      %v272 = vxor.u32 %v212, 2147483648
      %v273 = vxor.u32 %v213, 2147483648
      %v274 = vxor.u32 %v214, 2147483648
      %v275 = vxor.u32 %v215, 2147483648
      %v276 = vxor.u32 %v216, 2147483648
      %v277 = vxor.u32 %v217, 2147483648
      %v278 = vxor.u32 %v218, 2147483648
      %v279 = vxor.u32 %v219, 2147483648
      %v280 = vxor.u32 %v220, 2147483648
      %v281 = vxor.u32 %v221, 2147483648
      %v282 = vxor.u32 %v222, 2147483648
      %v283 = vxor.u32 %v223, 2147483648
      %v284 = vxor.u32 %v224, 2147483648
      %v285 = vxor.u32 %v225, 2147483648
      %v286 = vxor.u32 %v226, 2147483648
      %v287 = vxor.u32 %v227, 2147483648
      %v288 = vxor.u32 %v228, 2147483648
      %v289 = vxor.u32 %v229, 2147483648
      %v290 = vxor.u32 %v230, 2147483648
      %v291 = vxor.u32 %v231, 2147483648
      %v292 = vxor.u32 %v232, 2147483648
      %v293 = vxor.u32 %v233, 2147483648
      %v294 = vmul.f32 %v234, 1.442695
      %v295 = vpow.pop %v294
      %v296 = vmul.f32 %v235, 1.442695
      %v297 = vpow.pop %v296
      %v298 = vmul.f32 %v236, 1.442695
      %v299 = vpow.pop %v298
      %v300 = vmul.f32 %v237, 1.442695
      %v301 = vpow.pop %v300
      %v302 = vmul.f32 %v238, 1.442695
      %v303 = vpow.pop %v302
      %v304 = vmul.f32 %v239, 1.442695
      %v305 = vpow.pop %v304
      %v306 = vmul.f32 %v240, 1.442695
      %v307 = vpow.pop %v306
      %v308 = vmul.f32 %v241, 1.442695
      %v309 = vpow.pop %v308
      %v310 = vmul.f32 %v242, 1.442695
      %v311 = vpow.pop %v310
      %v312 = vmul.f32 %v243, 1.442695
      %v313 = vpow.pop %v312
      %v314 = vmul.f32 %v244, 1.442695
      %v315 = vpow.pop %v314
      %v316 = vmul.f32 %v245, 1.442695
      %v317 = vpow.pop %v316
      %v318 = vmul.f32 %v246, 1.442695
      %v319 = vpow.pop %v318
      %v320 = vmul.f32 %v247, 1.442695
      %v321 = vpow.pop %v320
      %v322 = vmul.f32 %v248, 1.442695
      %v323 = vpow.pop %v322
      %v324 = vmul.f32 %v249, 1.442695
      %v325 = vpow.pop %v324
      %v326 = vmul.f32 %v250, 1.442695
      %v327 = vpow.pop %v326
      %v328 = vmul.f32 %v251, 1.442695
      %v329 = vpow.pop %v328
      %v330 = vmul.f32 %v252, 1.442695
      %v331 = vpow.pop %v330
      %v332 = vmul.f32 %v253, 1.442695
      %v333 = vpow.pop %v332
      %v334 = vmul.f32 %v254, 1.442695
      %v335 = vpow.pop %v334
      %v336 = vmul.f32 %v255, 1.442695
      %v337 = vpow.pop %v336
      %v338 = vmul.f32 %v256, 1.442695
      %v339 = vpow.pop %v338
      %v340 = vmul.f32 %v257, 1.442695
      %v341 = vpow.pop %v340
      %v342 = vmul.f32 %v258, 1.442695
      %v343 = vpow.pop %v342
      %v344 = vmul.f32 %v259, 1.442695
      %v345 = vpow.pop %v344
      %v346 = vmul.f32 %v260, 1.442695
      %v347 = vpow.pop %v346
      %v348 = vmul.f32 %v261, 1.442695
      %v349 = vpow.pop %v348
      %v350 = vmul.f32 %v262, 1.442695
      %v351 = vpow.pop %v350
      %v352 = vmul.f32 %v263, 1.442695
      %v353 = vpow.pop %v352
      %v354 = vmul.f32 %v264, 1.442695
      %v355 = vpow.pop %v354
      %v356 = vmul.f32 %v265, 1.442695
      %v357 = vpow.pop %v356
      %v358 = vmul.f32 %v266, 1.442695
      %v359 = vpow.pop %v358
      %v360 = vmul.f32 %v267, 1.442695
      %v361 = vpow.pop %v360
      %v362 = vmul.f32 %v268, 1.442695
      %v363 = vpow.pop %v362
      %v364 = vmul.f32 %v269, 1.442695
      %v365 = vpow.pop %v364
      %v366 = vmul.f32 %v270, 1.442695
      %v367 = vpow.pop %v366
      %v368 = vmul.f32 %v271, 1.442695
      %v369 = vpow.pop %v368
      %v370 = vmul.f32 %v272, 1.442695
      %v371 = vpow.pop %v370
      %v372 = vmul.f32 %v273, 1.442695
      %v373 = vpow.pop %v372
      %v374 = vmul.f32 %v274, 1.442695
      %v375 = vpow.pop %v374
      %v376 = vmul.f32 %v275, 1.442695
      %v377 = vpow.pop %v376
      %v378 = vmul.f32 %v276, 1.442695
      %v379 = vpow.pop %v378
      %v380 = vmul.f32 %v277, 1.442695
      %v381 = vpow.pop %v380
      %v382 = vmul.f32 %v278, 1.442695
      %v383 = vpow.pop %v382
      %v384 = vmul.f32 %v279, 1.442695
      %v385 = vpow.pop %v384
      %v386 = vmul.f32 %v280, 1.442695
      %v387 = vpow.pop %v386
      %v388 = vmul.f32 %v281, 1.442695
      %v389 = vpow.pop %v388
      %v390 = vmul.f32 %v282, 1.442695
      %v391 = vpow.pop %v390
      %v392 = vmul.f32 %v283, 1.442695
      %v393 = vpow.pop %v392
      %v394 = vmul.f32 %v284, 1.442695
      %v395 = vpow.pop %v394
      %v396 = vmul.f32 %v285, 1.442695
      %v397 = vpow.pop %v396
      %v398 = vmul.f32 %v286, 1.442695
      %v399 = vpow.pop %v398
      %v400 = vmul.f32 %v287, 1.442695
      %v401 = vpow.pop %v400
      %v402 = vmul.f32 %v288, 1.442695
      %v403 = vpow.pop %v402
      %v404 = vmul.f32 %v289, 1.442695
      %v405 = vpow.pop %v404
      %v406 = vmul.f32 %v290, 1.442695
      %v407 = vpow.pop %v406
      %v408 = vmul.f32 %v291, 1.442695
      %v409 = vpow.pop %v408
      %v410 = vmul.f32 %v292, 1.442695
      %v411 = vpow.pop %v410
      %v412 = vmul.f32 %v293, 1.442695
      %v413 = vpow.pop %v412
      %v414 = vadd.f32 %v295, 1.0
      %v415 = vadd.f32 %v297, 1.0
      %v416 = vadd.f32 %v299, 1.0
      %v417 = vadd.f32 %v301, 1.0
      %v418 = vadd.f32 %v303, 1.0
      %v419 = vadd.f32 %v305, 1.0
      %v420 = vadd.f32 %v307, 1.0
      %v421 = vadd.f32 %v309, 1.0
      %v422 = vadd.f32 %v311, 1.0
      %v423 = vadd.f32 %v313, 1.0
      %v424 = vadd.f32 %v315, 1.0
      %v425 = vadd.f32 %v317, 1.0
      %v426 = vadd.f32 %v319, 1.0
      %v427 = vadd.f32 %v321, 1.0
      %v428 = vadd.f32 %v323, 1.0
      %v429 = vadd.f32 %v325, 1.0
      %v430 = vadd.f32 %v327, 1.0
      %v431 = vadd.f32 %v329, 1.0
      %v432 = vadd.f32 %v331, 1.0
      %v433 = vadd.f32 %v333, 1.0
      %v434 = vadd.f32 %v335, 1.0
      %v435 = vadd.f32 %v337, 1.0
      %v436 = vadd.f32 %v339, 1.0
      %v437 = vadd.f32 %v341, 1.0
      %v438 = vadd.f32 %v343, 1.0
      %v439 = vadd.f32 %v345, 1.0
      %v440 = vadd.f32 %v347, 1.0
      %v441 = vadd.f32 %v349, 1.0
      %v442 = vadd.f32 %v351, 1.0
      %v443 = vadd.f32 %v353, 1.0
      %v444 = vadd.f32 %v355, 1.0
      %v445 = vadd.f32 %v357, 1.0
      %v446 = vadd.f32 %v359, 1.0
      %v447 = vadd.f32 %v361, 1.0
      %v448 = vadd.f32 %v363, 1.0
      %v449 = vadd.f32 %v365, 1.0
      %v450 = vadd.f32 %v367, 1.0
      %v451 = vadd.f32 %v369, 1.0
      %v452 = vadd.f32 %v371, 1.0
      %v453 = vadd.f32 %v373, 1.0
      %v454 = vadd.f32 %v375, 1.0
      %v455 = vadd.f32 %v377, 1.0
      %v456 = vadd.f32 %v379, 1.0
      %v457 = vadd.f32 %v381, 1.0
      %v458 = vadd.f32 %v383, 1.0
      %v459 = vadd.f32 %v385, 1.0
      %v460 = vadd.f32 %v387, 1.0
      %v461 = vadd.f32 %v389, 1.0
      %v462 = vadd.f32 %v391, 1.0
      %v463 = vadd.f32 %v393, 1.0
      %v464 = vadd.f32 %v395, 1.0
      %v465 = vadd.f32 %v397, 1.0
      %v466 = vadd.f32 %v399, 1.0
      %v467 = vadd.f32 %v401, 1.0
      %v468 = vadd.f32 %v403, 1.0
      %v469 = vadd.f32 %v405, 1.0
      %v470 = vadd.f32 %v407, 1.0
      %v471 = vadd.f32 %v409, 1.0
      %v472 = vadd.f32 %v411, 1.0
      %v473 = vadd.f32 %v413, 1.0
      %v474 = vrcp.pop %v414
      %v475 = vmul.f32 %v414, %v474
      %v476 = vsub.f32 1.0, %v475
      %v477 = vmul.f32 %v474, %v476
      %v478 = vadd.f32 %v474, %v477
      %vm479 = vweird.f32 %v414
      %vm480 = vweird.f32 %v474
      %vm481 = vmor %vm479, %vm480
      %v482 = vsel %vm481, %v474, %v478
      %v483 = vand.u32 2147483647, %v414
      %vm484 = vcmp.eq.f32.partialorder %v483, 8.507059e+37
      %v485 = vand.u32 %v414, 2147483648
      %v486 = vor.u32 1.1754944e-38, %v485
      %v487 = vsel %vm484, %v486, %v482
      %v488 = vmul.f32 1.0, %v487
      %v489 = vrcp.pop %v415
      %v490 = vmul.f32 %v415, %v489
      %v491 = vsub.f32 1.0, %v490
      %v492 = vmul.f32 %v489, %v491
      %v493 = vadd.f32 %v489, %v492
      %vm494 = vweird.f32 %v415
      %vm495 = vweird.f32 %v489
      %vm496 = vmor %vm494, %vm495
      %v497 = vsel %vm496, %v489, %v493
      %v498 = vand.u32 2147483647, %v415
      %vm499 = vcmp.eq.f32.partialorder %v498, 8.507059e+37
      %v500 = vand.u32 %v415, 2147483648
      %v501 = vor.u32 1.1754944e-38, %v500
      %v502 = vsel %vm499, %v501, %v497
      %v503 = vmul.f32 1.0, %v502
      %v504 = vrcp.pop %v416
      %v505 = vmul.f32 %v416, %v504
      %v506 = vsub.f32 1.0, %v505
      %v507 = vmul.f32 %v504, %v506
      %v508 = vadd.f32 %v504, %v507
      %vm509 = vweird.f32 %v416
      %vm510 = vweird.f32 %v504
      %vm511 = vmor %vm509, %vm510
      %v512 = vsel %vm511, %v504, %v508
      %v513 = vand.u32 2147483647, %v416
      %vm514 = vcmp.eq.f32.partialorder %v513, 8.507059e+37
      %v515 = vand.u32 %v416, 2147483648
      %v516 = vor.u32 1.1754944e-38, %v515
      %v517 = vsel %vm514, %v516, %v512
      %v518 = vmul.f32 1.0, %v517
      %v519 = vrcp.pop %v417
      %v520 = vmul.f32 %v417, %v519
      %v521 = vsub.f32 1.0, %v520
      %v522 = vmul.f32 %v519, %v521
      %v523 = vadd.f32 %v519, %v522
      %vm524 = vweird.f32 %v417
      %vm525 = vweird.f32 %v519
      %vm526 = vmor %vm524, %vm525
      %v527 = vsel %vm526, %v519, %v523
      %v528 = vand.u32 2147483647, %v417
      %vm529 = vcmp.eq.f32.partialorder %v528, 8.507059e+37
      %v530 = vand.u32 %v417, 2147483648
      %v531 = vor.u32 1.1754944e-38, %v530
      %v532 = vsel %vm529, %v531, %v527
      %v533 = vmul.f32 1.0, %v532
      %v534 = vrcp.pop %v418
      %v535 = vmul.f32 %v418, %v534
      %v536 = vsub.f32 1.0, %v535
      %v537 = vmul.f32 %v534, %v536
      %v538 = vadd.f32 %v534, %v537
      %vm539 = vweird.f32 %v418
      %vm540 = vweird.f32 %v534
      %vm541 = vmor %vm539, %vm540
      %v542 = vsel %vm541, %v534, %v538
      %v543 = vand.u32 2147483647, %v418
      %vm544 = vcmp.eq.f32.partialorder %v543, 8.507059e+37
      %v545 = vand.u32 %v418, 2147483648
      %v546 = vor.u32 1.1754944e-38, %v545
      %v547 = vsel %vm544, %v546, %v542
      %v548 = vmul.f32 1.0, %v547
      %v549 = vrcp.pop %v419
      %v550 = vmul.f32 %v419, %v549
      %v551 = vsub.f32 1.0, %v550
      %v552 = vmul.f32 %v549, %v551
      %v553 = vadd.f32 %v549, %v552
      %vm554 = vweird.f32 %v419
      %vm555 = vweird.f32 %v549
      %vm556 = vmor %vm554, %vm555
      %v557 = vsel %vm556, %v549, %v553
      %v558 = vand.u32 2147483647, %v419
      %vm559 = vcmp.eq.f32.partialorder %v558, 8.507059e+37
      %v560 = vand.u32 %v419, 2147483648
      %v561 = vor.u32 1.1754944e-38, %v560
      %v562 = vsel %vm559, %v561, %v557
      %v563 = vmul.f32 1.0, %v562
      %v564 = vrcp.pop %v420
      %v565 = vmul.f32 %v420, %v564
      %v566 = vsub.f32 1.0, %v565
      %v567 = vmul.f32 %v564, %v566
      %v568 = vadd.f32 %v564, %v567
      %vm569 = vweird.f32 %v420
      %vm570 = vweird.f32 %v564
      %vm571 = vmor %vm569, %vm570
      %v572 = vsel %vm571, %v564, %v568
      %v573 = vand.u32 2147483647, %v420
      %vm574 = vcmp.eq.f32.partialorder %v573, 8.507059e+37
      %v575 = vand.u32 %v420, 2147483648
      %v576 = vor.u32 1.1754944e-38, %v575
      %v577 = vsel %vm574, %v576, %v572
      %v578 = vmul.f32 1.0, %v577
      %v579 = vrcp.pop %v421
      %v580 = vmul.f32 %v421, %v579
      %v581 = vsub.f32 1.0, %v580
      %v582 = vmul.f32 %v579, %v581
      %v583 = vadd.f32 %v579, %v582
      %vm584 = vweird.f32 %v421
      %vm585 = vweird.f32 %v579
      %vm586 = vmor %vm584, %vm585
      %v587 = vsel %vm586, %v579, %v583
      %v588 = vand.u32 2147483647, %v421
      %vm589 = vcmp.eq.f32.partialorder %v588, 8.507059e+37
      %v590 = vand.u32 %v421, 2147483648
      %v591 = vor.u32 1.1754944e-38, %v590
      %v592 = vsel %vm589, %v591, %v587
      %v593 = vmul.f32 1.0, %v592
      %v594 = vrcp.pop %v422
      %v595 = vmul.f32 %v422, %v594
      %v596 = vsub.f32 1.0, %v595
      %v597 = vmul.f32 %v594, %v596
      %v598 = vadd.f32 %v594, %v597
      %vm599 = vweird.f32 %v422
      %vm600 = vweird.f32 %v594
      %vm601 = vmor %vm599, %vm600
      %v602 = vsel %vm601, %v594, %v598
      %v603 = vand.u32 2147483647, %v422
      %vm604 = vcmp.eq.f32.partialorder %v603, 8.507059e+37
      %v605 = vand.u32 %v422, 2147483648
      %v606 = vor.u32 1.1754944e-38, %v605
      %v607 = vsel %vm604, %v606, %v602
      %v608 = vmul.f32 1.0, %v607
      %v609 = vrcp.pop %v423
      %v610 = vmul.f32 %v423, %v609
      %v611 = vsub.f32 1.0, %v610
      %v612 = vmul.f32 %v609, %v611
      %v613 = vadd.f32 %v609, %v612
      %vm614 = vweird.f32 %v423
      %vm615 = vweird.f32 %v609
      %vm616 = vmor %vm614, %vm615
      %v617 = vsel %vm616, %v609, %v613
      %v618 = vand.u32 2147483647, %v423
      %vm619 = vcmp.eq.f32.partialorder %v618, 8.507059e+37
      %v620 = vand.u32 %v423, 2147483648
      %v621 = vor.u32 1.1754944e-38, %v620
      %v622 = vsel %vm619, %v621, %v617
      %v623 = vmul.f32 1.0, %v622
      %v624 = vrcp.pop %v424
      %v625 = vmul.f32 %v424, %v624
      %v626 = vsub.f32 1.0, %v625
      %v627 = vmul.f32 %v624, %v626
      %v628 = vadd.f32 %v624, %v627
      %vm629 = vweird.f32 %v424
      %vm630 = vweird.f32 %v624
      %vm631 = vmor %vm629, %vm630
      %v632 = vsel %vm631, %v624, %v628
      %v633 = vand.u32 2147483647, %v424
      %vm634 = vcmp.eq.f32.partialorder %v633, 8.507059e+37
      %v635 = vand.u32 %v424, 2147483648
      %v636 = vor.u32 1.1754944e-38, %v635
      %v637 = vsel %vm634, %v636, %v632
      %v638 = vmul.f32 1.0, %v637
      %v639 = vrcp.pop %v425
      %v640 = vmul.f32 %v425, %v639
      %v641 = vsub.f32 1.0, %v640
      %v642 = vmul.f32 %v639, %v641
      %v643 = vadd.f32 %v639, %v642
      %vm644 = vweird.f32 %v425
      %vm645 = vweird.f32 %v639
      %vm646 = vmor %vm644, %vm645
      %v647 = vsel %vm646, %v639, %v643
      %v648 = vand.u32 2147483647, %v425
      %vm649 = vcmp.eq.f32.partialorder %v648, 8.507059e+37
      %v650 = vand.u32 %v425, 2147483648
      %v651 = vor.u32 1.1754944e-38, %v650
      %v652 = vsel %vm649, %v651, %v647
      %v653 = vmul.f32 1.0, %v652
      %v654 = vrcp.pop %v426
      %v655 = vmul.f32 %v426, %v654
      %v656 = vsub.f32 1.0, %v655
      %v657 = vmul.f32 %v654, %v656
      %v658 = vadd.f32 %v654, %v657
      %vm659 = vweird.f32 %v426
      %vm660 = vweird.f32 %v654
      %vm661 = vmor %vm659, %vm660
      %v662 = vsel %vm661, %v654, %v658
      %v663 = vand.u32 2147483647, %v426
      %vm664 = vcmp.eq.f32.partialorder %v663, 8.507059e+37
      %v665 = vand.u32 %v426, 2147483648
      %v666 = vor.u32 1.1754944e-38, %v665
      %v667 = vsel %vm664, %v666, %v662
      %v668 = vmul.f32 1.0, %v667
      %v669 = vrcp.pop %v427
      %v670 = vmul.f32 %v427, %v669
      %v671 = vsub.f32 1.0, %v670
      %v672 = vmul.f32 %v669, %v671
      %v673 = vadd.f32 %v669, %v672
      %vm674 = vweird.f32 %v427
      %vm675 = vweird.f32 %v669
      %vm676 = vmor %vm674, %vm675
      %v677 = vsel %vm676, %v669, %v673
      %v678 = vand.u32 2147483647, %v427
      %vm679 = vcmp.eq.f32.partialorder %v678, 8.507059e+37
      %v680 = vand.u32 %v427, 2147483648
      %v681 = vor.u32 1.1754944e-38, %v680
      %v682 = vsel %vm679, %v681, %v677
      %v683 = vmul.f32 1.0, %v682
      %v684 = vrcp.pop %v428
      %v685 = vmul.f32 %v428, %v684
      %v686 = vsub.f32 1.0, %v685
      %v687 = vmul.f32 %v684, %v686
      %v688 = vadd.f32 %v684, %v687
      %vm689 = vweird.f32 %v428
      %vm690 = vweird.f32 %v684
      %vm691 = vmor %vm689, %vm690
      %v692 = vsel %vm691, %v684, %v688
      %v693 = vand.u32 2147483647, %v428
      %vm694 = vcmp.eq.f32.partialorder %v693, 8.507059e+37
      %v695 = vand.u32 %v428, 2147483648
      %v696 = vor.u32 1.1754944e-38, %v695
      %v697 = vsel %vm694, %v696, %v692
      %v698 = vmul.f32 1.0, %v697
      %v699 = vrcp.pop %v429
      %v700 = vmul.f32 %v429, %v699
      %v701 = vsub.f32 1.0, %v700
      %v702 = vmul.f32 %v699, %v701
      %v703 = vadd.f32 %v699, %v702
      %vm704 = vweird.f32 %v429
      %vm705 = vweird.f32 %v699
      %vm706 = vmor %vm704, %vm705
      %v707 = vsel %vm706, %v699, %v703
      %v708 = vand.u32 2147483647, %v429
      %vm709 = vcmp.eq.f32.partialorder %v708, 8.507059e+37
      %v710 = vand.u32 %v429, 2147483648
      %v711 = vor.u32 1.1754944e-38, %v710
      %v712 = vsel %vm709, %v711, %v707
      %v713 = vmul.f32 1.0, %v712
      %v714 = vrcp.pop %v430
      %v715 = vmul.f32 %v430, %v714
      %v716 = vsub.f32 1.0, %v715
      %v717 = vmul.f32 %v714, %v716
      %v718 = vadd.f32 %v714, %v717
      %vm719 = vweird.f32 %v430
      %vm720 = vweird.f32 %v714
      %vm721 = vmor %vm719, %vm720
      %v722 = vsel %vm721, %v714, %v718
      %v723 = vand.u32 2147483647, %v430
      %vm724 = vcmp.eq.f32.partialorder %v723, 8.507059e+37
      %v725 = vand.u32 %v430, 2147483648
      %v726 = vor.u32 1.1754944e-38, %v725
      %v727 = vsel %vm724, %v726, %v722
      %v728 = vmul.f32 1.0, %v727
      %v729 = vrcp.pop %v431
      %v730 = vmul.f32 %v431, %v729
      %v731 = vsub.f32 1.0, %v730
      %v732 = vmul.f32 %v729, %v731
      %v733 = vadd.f32 %v729, %v732
      %vm734 = vweird.f32 %v431
      %vm735 = vweird.f32 %v729
      %vm736 = vmor %vm734, %vm735
      %v737 = vsel %vm736, %v729, %v733
      %v738 = vand.u32 2147483647, %v431
      %vm739 = vcmp.eq.f32.partialorder %v738, 8.507059e+37
      %v740 = vand.u32 %v431, 2147483648
      %v741 = vor.u32 1.1754944e-38, %v740
      %v742 = vsel %vm739, %v741, %v737
      %v743 = vmul.f32 1.0, %v742
      %v744 = vrcp.pop %v432
      %v745 = vmul.f32 %v432, %v744
      %v746 = vsub.f32 1.0, %v745
      %v747 = vmul.f32 %v744, %v746
      %v748 = vadd.f32 %v744, %v747
      %vm749 = vweird.f32 %v432
      %vm750 = vweird.f32 %v744
      %vm751 = vmor %vm749, %vm750
      %v752 = vsel %vm751, %v744, %v748
      %v753 = vand.u32 2147483647, %v432
      %vm754 = vcmp.eq.f32.partialorder %v753, 8.507059e+37
      %v755 = vand.u32 %v432, 2147483648
      %v756 = vor.u32 1.1754944e-38, %v755
      %v757 = vsel %vm754, %v756, %v752
      %v758 = vmul.f32 1.0, %v757
      %v759 = vrcp.pop %v433
      %v760 = vmul.f32 %v433, %v759
      %v761 = vsub.f32 1.0, %v760
      %v762 = vmul.f32 %v759, %v761
      %v763 = vadd.f32 %v759, %v762
      %vm764 = vweird.f32 %v433
      %vm765 = vweird.f32 %v759
      %vm766 = vmor %vm764, %vm765
      %v767 = vsel %vm766, %v759, %v763
      %v768 = vand.u32 2147483647, %v433
      %vm769 = vcmp.eq.f32.partialorder %v768, 8.507059e+37
      %v770 = vand.u32 %v433, 2147483648
      %v771 = vor.u32 1.1754944e-38, %v770
      %v772 = vsel %vm769, %v771, %v767
      %v773 = vmul.f32 1.0, %v772
      %v774 = vrcp.pop %v434
      %v775 = vmul.f32 %v434, %v774
      %v776 = vsub.f32 1.0, %v775
      %v777 = vmul.f32 %v774, %v776
      %v778 = vadd.f32 %v774, %v777
      %vm779 = vweird.f32 %v434
      %vm780 = vweird.f32 %v774
      %vm781 = vmor %vm779, %vm780
      %v782 = vsel %vm781, %v774, %v778
      %v783 = vand.u32 2147483647, %v434
      %vm784 = vcmp.eq.f32.partialorder %v783, 8.507059e+37
      %v785 = vand.u32 %v434, 2147483648
      %v786 = vor.u32 1.1754944e-38, %v785
      %v787 = vsel %vm784, %v786, %v782
      %v788 = vmul.f32 1.0, %v787
      %v789 = vrcp.pop %v435
      %v790 = vmul.f32 %v435, %v789
      %v791 = vsub.f32 1.0, %v790
      %v792 = vmul.f32 %v789, %v791
      %v793 = vadd.f32 %v789, %v792
      %vm794 = vweird.f32 %v435
      %vm795 = vweird.f32 %v789
      %vm796 = vmor %vm794, %vm795
      %v797 = vsel %vm796, %v789, %v793
      %v798 = vand.u32 2147483647, %v435
      %vm799 = vcmp.eq.f32.partialorder %v798, 8.507059e+37
      %v800 = vand.u32 %v435, 2147483648
      %v801 = vor.u32 1.1754944e-38, %v800
      %v802 = vsel %vm799, %v801, %v797
      %v803 = vmul.f32 1.0, %v802
      %v804 = vrcp.pop %v436
      %v805 = vmul.f32 %v436, %v804
      %v806 = vsub.f32 1.0, %v805
      %v807 = vmul.f32 %v804, %v806
      %v808 = vadd.f32 %v804, %v807
      %vm809 = vweird.f32 %v436
      %vm810 = vweird.f32 %v804
      %vm811 = vmor %vm809, %vm810
      %v812 = vsel %vm811, %v804, %v808
      %v813 = vand.u32 2147483647, %v436
      %vm814 = vcmp.eq.f32.partialorder %v813, 8.507059e+37
      %v815 = vand.u32 %v436, 2147483648
      %v816 = vor.u32 1.1754944e-38, %v815
      %v817 = vsel %vm814, %v816, %v812
      %v818 = vmul.f32 1.0, %v817
      %v819 = vrcp.pop %v437
      %v820 = vmul.f32 %v437, %v819
      %v821 = vsub.f32 1.0, %v820
      %v822 = vmul.f32 %v819, %v821
      %v823 = vadd.f32 %v819, %v822
      %vm824 = vweird.f32 %v437
      %vm825 = vweird.f32 %v819
      %vm826 = vmor %vm824, %vm825
      %v827 = vsel %vm826, %v819, %v823
      %v828 = vand.u32 2147483647, %v437
      %vm829 = vcmp.eq.f32.partialorder %v828, 8.507059e+37
      %v830 = vand.u32 %v437, 2147483648
      %v831 = vor.u32 1.1754944e-38, %v830
      %v832 = vsel %vm829, %v831, %v827
      %v833 = vmul.f32 1.0, %v832
      %v834 = vrcp.pop %v438
      %v835 = vmul.f32 %v438, %v834
      %v836 = vsub.f32 1.0, %v835
      %v837 = vmul.f32 %v834, %v836
      %v838 = vadd.f32 %v834, %v837
      %vm839 = vweird.f32 %v438
      %vm840 = vweird.f32 %v834
      %vm841 = vmor %vm839, %vm840
      %v842 = vsel %vm841, %v834, %v838
      %v843 = vand.u32 2147483647, %v438
      %vm844 = vcmp.eq.f32.partialorder %v843, 8.507059e+37
      %v845 = vand.u32 %v438, 2147483648
      %v846 = vor.u32 1.1754944e-38, %v845
      %v847 = vsel %vm844, %v846, %v842
      %v848 = vmul.f32 1.0, %v847
      %v849 = vrcp.pop %v439
      %v850 = vmul.f32 %v439, %v849
      %v851 = vsub.f32 1.0, %v850
      %v852 = vmul.f32 %v849, %v851
      %v853 = vadd.f32 %v849, %v852
      %vm854 = vweird.f32 %v439
      %vm855 = vweird.f32 %v849
      %vm856 = vmor %vm854, %vm855
      %v857 = vsel %vm856, %v849, %v853
      %v858 = vand.u32 2147483647, %v439
      %vm859 = vcmp.eq.f32.partialorder %v858, 8.507059e+37
      %v860 = vand.u32 %v439, 2147483648
      %v861 = vor.u32 1.1754944e-38, %v860
      %v862 = vsel %vm859, %v861, %v857
      %v863 = vmul.f32 1.0, %v862
      %v864 = vrcp.pop %v440
      %v865 = vmul.f32 %v440, %v864
      %v866 = vsub.f32 1.0, %v865
      %v867 = vmul.f32 %v864, %v866
      %v868 = vadd.f32 %v864, %v867
      %vm869 = vweird.f32 %v440
      %vm870 = vweird.f32 %v864
      %vm871 = vmor %vm869, %vm870
      %v872 = vsel %vm871, %v864, %v868
      %v873 = vand.u32 2147483647, %v440
      %vm874 = vcmp.eq.f32.partialorder %v873, 8.507059e+37
      %v875 = vand.u32 %v440, 2147483648
      %v876 = vor.u32 1.1754944e-38, %v875
      %v877 = vsel %vm874, %v876, %v872
      %v878 = vmul.f32 1.0, %v877
      %v879 = vrcp.pop %v441
      %v880 = vmul.f32 %v441, %v879
      %v881 = vsub.f32 1.0, %v880
      %v882 = vmul.f32 %v879, %v881
      %v883 = vadd.f32 %v879, %v882
      %vm884 = vweird.f32 %v441
      %vm885 = vweird.f32 %v879
      %vm886 = vmor %vm884, %vm885
      %v887 = vsel %vm886, %v879, %v883
      %v888 = vand.u32 2147483647, %v441
      %vm889 = vcmp.eq.f32.partialorder %v888, 8.507059e+37
      %v890 = vand.u32 %v441, 2147483648
      %v891 = vor.u32 1.1754944e-38, %v890
      %v892 = vsel %vm889, %v891, %v887
      %v893 = vmul.f32 1.0, %v892
      %v894 = vrcp.pop %v442
      %v895 = vmul.f32 %v442, %v894
      %v896 = vsub.f32 1.0, %v895
      %v897 = vmul.f32 %v894, %v896
      %v898 = vadd.f32 %v894, %v897
      %vm899 = vweird.f32 %v442
      %vm900 = vweird.f32 %v894
      %vm901 = vmor %vm899, %vm900
      %v902 = vsel %vm901, %v894, %v898
      %v903 = vand.u32 2147483647, %v442
      %vm904 = vcmp.eq.f32.partialorder %v903, 8.507059e+37
      %v905 = vand.u32 %v442, 2147483648
      %v906 = vor.u32 1.1754944e-38, %v905
      %v907 = vsel %vm904, %v906, %v902
      %v908 = vmul.f32 1.0, %v907
      %v909 = vrcp.pop %v443
      %v910 = vmul.f32 %v443, %v909
      %v911 = vsub.f32 1.0, %v910
      %v912 = vmul.f32 %v909, %v911
      %v913 = vadd.f32 %v909, %v912
      %vm914 = vweird.f32 %v443
      %vm915 = vweird.f32 %v909
      %vm916 = vmor %vm914, %vm915
      %v917 = vsel %vm916, %v909, %v913
      %v918 = vand.u32 2147483647, %v443
      %vm919 = vcmp.eq.f32.partialorder %v918, 8.507059e+37
      %v920 = vand.u32 %v443, 2147483648
      %v921 = vor.u32 1.1754944e-38, %v920
      %v922 = vsel %vm919, %v921, %v917
      %v923 = vmul.f32 1.0, %v922
      %v924 = vrcp.pop %v444
      %v925 = vmul.f32 %v444, %v924
      %v926 = vsub.f32 1.0, %v925
      %v927 = vmul.f32 %v924, %v926
      %v928 = vadd.f32 %v924, %v927
      %vm929 = vweird.f32 %v444
      %vm930 = vweird.f32 %v924
      %vm931 = vmor %vm929, %vm930
      %v932 = vsel %vm931, %v924, %v928
      %v933 = vand.u32 2147483647, %v444
      %vm934 = vcmp.eq.f32.partialorder %v933, 8.507059e+37
      %v935 = vand.u32 %v444, 2147483648
      %v936 = vor.u32 1.1754944e-38, %v935
      %v937 = vsel %vm934, %v936, %v932
      %v938 = vmul.f32 1.0, %v937
      %v939 = vrcp.pop %v445
      %v940 = vmul.f32 %v445, %v939
      %v941 = vsub.f32 1.0, %v940
      %v942 = vmul.f32 %v939, %v941
      %v943 = vadd.f32 %v939, %v942
      %vm944 = vweird.f32 %v445
      %vm945 = vweird.f32 %v939
      %vm946 = vmor %vm944, %vm945
      %v947 = vsel %vm946, %v939, %v943
      %v948 = vand.u32 2147483647, %v445
      %vm949 = vcmp.eq.f32.partialorder %v948, 8.507059e+37
      %v950 = vand.u32 %v445, 2147483648
      %v951 = vor.u32 1.1754944e-38, %v950
      %v952 = vsel %vm949, %v951, %v947
      %v953 = vmul.f32 1.0, %v952
      %v954 = vrcp.pop %v446
      %v955 = vmul.f32 %v446, %v954
      %v956 = vsub.f32 1.0, %v955
      %v957 = vmul.f32 %v954, %v956
      %v958 = vadd.f32 %v954, %v957
      %vm959 = vweird.f32 %v446
      %vm960 = vweird.f32 %v954
      %vm961 = vmor %vm959, %vm960
      %v962 = vsel %vm961, %v954, %v958
      %v963 = vand.u32 2147483647, %v446
      %vm964 = vcmp.eq.f32.partialorder %v963, 8.507059e+37
      %v965 = vand.u32 %v446, 2147483648
      %v966 = vor.u32 1.1754944e-38, %v965
      %v967 = vsel %vm964, %v966, %v962
      %v968 = vmul.f32 1.0, %v967
      %v969 = vrcp.pop %v447
      %v970 = vmul.f32 %v447, %v969
      %v971 = vsub.f32 1.0, %v970
      %v972 = vmul.f32 %v969, %v971
      %v973 = vadd.f32 %v969, %v972
      %vm974 = vweird.f32 %v447
      %vm975 = vweird.f32 %v969
      %vm976 = vmor %vm974, %vm975
      %v977 = vsel %vm976, %v969, %v973
      %v978 = vand.u32 2147483647, %v447
      %vm979 = vcmp.eq.f32.partialorder %v978, 8.507059e+37
      %v980 = vand.u32 %v447, 2147483648
      %v981 = vor.u32 1.1754944e-38, %v980
      %v982 = vsel %vm979, %v981, %v977
      %v983 = vmul.f32 1.0, %v982
      %v984 = vrcp.pop %v448
      %v985 = vmul.f32 %v448, %v984
      %v986 = vsub.f32 1.0, %v985
      %v987 = vmul.f32 %v984, %v986
      %v988 = vadd.f32 %v984, %v987
      %vm989 = vweird.f32 %v448
      %vm990 = vweird.f32 %v984
      %vm991 = vmor %vm989, %vm990
      %v992 = vsel %vm991, %v984, %v988
      %v993 = vand.u32 2147483647, %v448
      %vm994 = vcmp.eq.f32.partialorder %v993, 8.507059e+37
      %v995 = vand.u32 %v448, 2147483648
      %v996 = vor.u32 1.1754944e-38, %v995
      %v997 = vsel %vm994, %v996, %v992
      %v998 = vmul.f32 1.0, %v997
      %v999 = vrcp.pop %v449
      %v1000 = vmul.f32 %v449, %v999
      %v1001 = vsub.f32 1.0, %v1000
      %v1002 = vmul.f32 %v999, %v1001
      %v1003 = vadd.f32 %v999, %v1002
      %vm1004 = vweird.f32 %v449
      %vm1005 = vweird.f32 %v999
      %vm1006 = vmor %vm1004, %vm1005
      %v1007 = vsel %vm1006, %v999, %v1003
      %v1008 = vand.u32 2147483647, %v449
      %vm1009 = vcmp.eq.f32.partialorder %v1008, 8.507059e+37
      %v1010 = vand.u32 %v449, 2147483648
      %v1011 = vor.u32 1.1754944e-38, %v1010
      %v1012 = vsel %vm1009, %v1011, %v1007
      %v1013 = vmul.f32 1.0, %v1012
      %v1014 = vrcp.pop %v450
      %v1015 = vmul.f32 %v450, %v1014
      %v1016 = vsub.f32 1.0, %v1015
      %v1017 = vmul.f32 %v1014, %v1016
      %v1018 = vadd.f32 %v1014, %v1017
      %vm1019 = vweird.f32 %v450
      %vm1020 = vweird.f32 %v1014
      %vm1021 = vmor %vm1019, %vm1020
      %v1022 = vsel %vm1021, %v1014, %v1018
      %v1023 = vand.u32 2147483647, %v450
      %vm1024 = vcmp.eq.f32.partialorder %v1023, 8.507059e+37
      %v1025 = vand.u32 %v450, 2147483648
      %v1026 = vor.u32 1.1754944e-38, %v1025
      %v1027 = vsel %vm1024, %v1026, %v1022
      %v1028 = vmul.f32 1.0, %v1027
      %v1029 = vrcp.pop %v451
      %v1030 = vmul.f32 %v451, %v1029
      %v1031 = vsub.f32 1.0, %v1030
      %v1032 = vmul.f32 %v1029, %v1031
      %v1033 = vadd.f32 %v1029, %v1032
      %vm1034 = vweird.f32 %v451
      %vm1035 = vweird.f32 %v1029
      %vm1036 = vmor %vm1034, %vm1035
      %v1037 = vsel %vm1036, %v1029, %v1033
      %v1038 = vand.u32 2147483647, %v451
      %vm1039 = vcmp.eq.f32.partialorder %v1038, 8.507059e+37
      %v1040 = vand.u32 %v451, 2147483648
      %v1041 = vor.u32 1.1754944e-38, %v1040
      %v1042 = vsel %vm1039, %v1041, %v1037
      %v1043 = vmul.f32 1.0, %v1042
      %v1044 = vrcp.pop %v452
      %v1045 = vmul.f32 %v452, %v1044
      %v1046 = vsub.f32 1.0, %v1045
      %v1047 = vmul.f32 %v1044, %v1046
      %v1048 = vadd.f32 %v1044, %v1047
      %vm1049 = vweird.f32 %v452
      %vm1050 = vweird.f32 %v1044
      %vm1051 = vmor %vm1049, %vm1050
      %v1052 = vsel %vm1051, %v1044, %v1048
      %v1053 = vand.u32 2147483647, %v452
      %vm1054 = vcmp.eq.f32.partialorder %v1053, 8.507059e+37
      %v1055 = vand.u32 %v452, 2147483648
      %v1056 = vor.u32 1.1754944e-38, %v1055
      %v1057 = vsel %vm1054, %v1056, %v1052
      %v1058 = vmul.f32 1.0, %v1057
      %v1059 = vrcp.pop %v453
      %v1060 = vmul.f32 %v453, %v1059
      %v1061 = vsub.f32 1.0, %v1060
      %v1062 = vmul.f32 %v1059, %v1061
      %v1063 = vadd.f32 %v1059, %v1062
      %vm1064 = vweird.f32 %v453
      %vm1065 = vweird.f32 %v1059
      %vm1066 = vmor %vm1064, %vm1065
      %v1067 = vsel %vm1066, %v1059, %v1063
      %v1068 = vand.u32 2147483647, %v453
      %vm1069 = vcmp.eq.f32.partialorder %v1068, 8.507059e+37
      %v1070 = vand.u32 %v453, 2147483648
      %v1071 = vor.u32 1.1754944e-38, %v1070
      %v1072 = vsel %vm1069, %v1071, %v1067
      %v1073 = vmul.f32 1.0, %v1072
      %v1074 = vrcp.pop %v454
      %v1075 = vmul.f32 %v454, %v1074
      %v1076 = vsub.f32 1.0, %v1075
      %v1077 = vmul.f32 %v1074, %v1076
      %v1078 = vadd.f32 %v1074, %v1077
      %vm1079 = vweird.f32 %v454
      %vm1080 = vweird.f32 %v1074
      %vm1081 = vmor %vm1079, %vm1080
      %v1082 = vsel %vm1081, %v1074, %v1078
      %v1083 = vand.u32 2147483647, %v454
      %vm1084 = vcmp.eq.f32.partialorder %v1083, 8.507059e+37
      %v1085 = vand.u32 %v454, 2147483648
      %v1086 = vor.u32 1.1754944e-38, %v1085
      %v1087 = vsel %vm1084, %v1086, %v1082
      %v1088 = vmul.f32 1.0, %v1087
      %v1089 = vrcp.pop %v455
      %v1090 = vmul.f32 %v455, %v1089
      %v1091 = vsub.f32 1.0, %v1090
      %v1092 = vmul.f32 %v1089, %v1091
      %v1093 = vadd.f32 %v1089, %v1092
      %vm1094 = vweird.f32 %v455
      %vm1095 = vweird.f32 %v1089
      %vm1096 = vmor %vm1094, %vm1095
      %v1097 = vsel %vm1096, %v1089, %v1093
      %v1098 = vand.u32 2147483647, %v455
      %vm1099 = vcmp.eq.f32.partialorder %v1098, 8.507059e+37
      %v1100 = vand.u32 %v455, 2147483648
      %v1101 = vor.u32 1.1754944e-38, %v1100
      %v1102 = vsel %vm1099, %v1101, %v1097
      %v1103 = vmul.f32 1.0, %v1102
      %v1104 = vrcp.pop %v456
      %v1105 = vmul.f32 %v456, %v1104
      %v1106 = vsub.f32 1.0, %v1105
      %v1107 = vmul.f32 %v1104, %v1106
      %v1108 = vadd.f32 %v1104, %v1107
      %vm1109 = vweird.f32 %v456
      %vm1110 = vweird.f32 %v1104
      %vm1111 = vmor %vm1109, %vm1110
      %v1112 = vsel %vm1111, %v1104, %v1108
      %v1113 = vand.u32 2147483647, %v456
      %vm1114 = vcmp.eq.f32.partialorder %v1113, 8.507059e+37
      %v1115 = vand.u32 %v456, 2147483648
      %v1116 = vor.u32 1.1754944e-38, %v1115
      %v1117 = vsel %vm1114, %v1116, %v1112
      %v1118 = vmul.f32 1.0, %v1117
      %v1119 = vrcp.pop %v457
      %v1120 = vmul.f32 %v457, %v1119
      %v1121 = vsub.f32 1.0, %v1120
      %v1122 = vmul.f32 %v1119, %v1121
      %v1123 = vadd.f32 %v1119, %v1122
      %vm1124 = vweird.f32 %v457
      %vm1125 = vweird.f32 %v1119
      %vm1126 = vmor %vm1124, %vm1125
      %v1127 = vsel %vm1126, %v1119, %v1123
      %v1128 = vand.u32 2147483647, %v457
      %vm1129 = vcmp.eq.f32.partialorder %v1128, 8.507059e+37
      %v1130 = vand.u32 %v457, 2147483648
      %v1131 = vor.u32 1.1754944e-38, %v1130
      %v1132 = vsel %vm1129, %v1131, %v1127
      %v1133 = vmul.f32 1.0, %v1132
      %v1134 = vrcp.pop %v458
      %v1135 = vmul.f32 %v458, %v1134
      %v1136 = vsub.f32 1.0, %v1135
      %v1137 = vmul.f32 %v1134, %v1136
      %v1138 = vadd.f32 %v1134, %v1137
      %vm1139 = vweird.f32 %v458
      %vm1140 = vweird.f32 %v1134
      %vm1141 = vmor %vm1139, %vm1140
      %v1142 = vsel %vm1141, %v1134, %v1138
      %v1143 = vand.u32 2147483647, %v458
      %vm1144 = vcmp.eq.f32.partialorder %v1143, 8.507059e+37
      %v1145 = vand.u32 %v458, 2147483648
      %v1146 = vor.u32 1.1754944e-38, %v1145
      %v1147 = vsel %vm1144, %v1146, %v1142
      %v1148 = vmul.f32 1.0, %v1147
      %v1149 = vrcp.pop %v459
      %v1150 = vmul.f32 %v459, %v1149
      %v1151 = vsub.f32 1.0, %v1150
      %v1152 = vmul.f32 %v1149, %v1151
      %v1153 = vadd.f32 %v1149, %v1152
      %vm1154 = vweird.f32 %v459
      %vm1155 = vweird.f32 %v1149
      %vm1156 = vmor %vm1154, %vm1155
      %v1157 = vsel %vm1156, %v1149, %v1153
      %v1158 = vand.u32 2147483647, %v459
      %vm1159 = vcmp.eq.f32.partialorder %v1158, 8.507059e+37
      %v1160 = vand.u32 %v459, 2147483648
      %v1161 = vor.u32 1.1754944e-38, %v1160
      %v1162 = vsel %vm1159, %v1161, %v1157
      %v1163 = vmul.f32 1.0, %v1162
      %v1164 = vrcp.pop %v460
      %v1165 = vmul.f32 %v460, %v1164
      %v1166 = vsub.f32 1.0, %v1165
      %v1167 = vmul.f32 %v1164, %v1166
      %v1168 = vadd.f32 %v1164, %v1167
      %vm1169 = vweird.f32 %v460
      %vm1170 = vweird.f32 %v1164
      %vm1171 = vmor %vm1169, %vm1170
      %v1172 = vsel %vm1171, %v1164, %v1168
      %v1173 = vand.u32 2147483647, %v460
      %vm1174 = vcmp.eq.f32.partialorder %v1173, 8.507059e+37
      %v1175 = vand.u32 %v460, 2147483648
      %v1176 = vor.u32 1.1754944e-38, %v1175
      %v1177 = vsel %vm1174, %v1176, %v1172
      %v1178 = vmul.f32 1.0, %v1177
      %v1179 = vrcp.pop %v461
      %v1180 = vmul.f32 %v461, %v1179
      %v1181 = vsub.f32 1.0, %v1180
      %v1182 = vmul.f32 %v1179, %v1181
      %v1183 = vadd.f32 %v1179, %v1182
      %vm1184 = vweird.f32 %v461
      %vm1185 = vweird.f32 %v1179
      %vm1186 = vmor %vm1184, %vm1185
      %v1187 = vsel %vm1186, %v1179, %v1183
      %v1188 = vand.u32 2147483647, %v461
      %vm1189 = vcmp.eq.f32.partialorder %v1188, 8.507059e+37
      %v1190 = vand.u32 %v461, 2147483648
      %v1191 = vor.u32 1.1754944e-38, %v1190
      %v1192 = vsel %vm1189, %v1191, %v1187
      %v1193 = vmul.f32 1.0, %v1192
      %v1194 = vrcp.pop %v462
      %v1195 = vmul.f32 %v462, %v1194
      %v1196 = vsub.f32 1.0, %v1195
      %v1197 = vmul.f32 %v1194, %v1196
      %v1198 = vadd.f32 %v1194, %v1197
      %vm1199 = vweird.f32 %v462
      %vm1200 = vweird.f32 %v1194
      %vm1201 = vmor %vm1199, %vm1200
      %v1202 = vsel %vm1201, %v1194, %v1198
      %v1203 = vand.u32 2147483647, %v462
      %vm1204 = vcmp.eq.f32.partialorder %v1203, 8.507059e+37
      %v1205 = vand.u32 %v462, 2147483648
      %v1206 = vor.u32 1.1754944e-38, %v1205
      %v1207 = vsel %vm1204, %v1206, %v1202
      %v1208 = vmul.f32 1.0, %v1207
      %v1209 = vrcp.pop %v463
      %v1210 = vmul.f32 %v463, %v1209
      %v1211 = vsub.f32 1.0, %v1210
      %v1212 = vmul.f32 %v1209, %v1211
      %v1213 = vadd.f32 %v1209, %v1212
      %vm1214 = vweird.f32 %v463
      %vm1215 = vweird.f32 %v1209
      %vm1216 = vmor %vm1214, %vm1215
      %v1217 = vsel %vm1216, %v1209, %v1213
      %v1218 = vand.u32 2147483647, %v463
      %vm1219 = vcmp.eq.f32.partialorder %v1218, 8.507059e+37
      %v1220 = vand.u32 %v463, 2147483648
      %v1221 = vor.u32 1.1754944e-38, %v1220
      %v1222 = vsel %vm1219, %v1221, %v1217
      %v1223 = vmul.f32 1.0, %v1222
      %v1224 = vrcp.pop %v464
      %v1225 = vmul.f32 %v464, %v1224
      %v1226 = vsub.f32 1.0, %v1225
      %v1227 = vmul.f32 %v1224, %v1226
      %v1228 = vadd.f32 %v1224, %v1227
      %vm1229 = vweird.f32 %v464
      %vm1230 = vweird.f32 %v1224
      %vm1231 = vmor %vm1229, %vm1230
      %v1232 = vsel %vm1231, %v1224, %v1228
      %v1233 = vand.u32 2147483647, %v464
      %vm1234 = vcmp.eq.f32.partialorder %v1233, 8.507059e+37
      %v1235 = vand.u32 %v464, 2147483648
      %v1236 = vor.u32 1.1754944e-38, %v1235
      %v1237 = vsel %vm1234, %v1236, %v1232
      %v1238 = vmul.f32 1.0, %v1237
      %v1239 = vrcp.pop %v465
      %v1240 = vmul.f32 %v465, %v1239
      %v1241 = vsub.f32 1.0, %v1240
      %v1242 = vmul.f32 %v1239, %v1241
      %v1243 = vadd.f32 %v1239, %v1242
      %vm1244 = vweird.f32 %v465
      %vm1245 = vweird.f32 %v1239
      %vm1246 = vmor %vm1244, %vm1245
      %v1247 = vsel %vm1246, %v1239, %v1243
      %v1248 = vand.u32 2147483647, %v465
      %vm1249 = vcmp.eq.f32.partialorder %v1248, 8.507059e+37
      %v1250 = vand.u32 %v465, 2147483648
      %v1251 = vor.u32 1.1754944e-38, %v1250
      %v1252 = vsel %vm1249, %v1251, %v1247
      %v1253 = vmul.f32 1.0, %v1252
      %v1254 = vrcp.pop %v466
      %v1255 = vmul.f32 %v466, %v1254
      %v1256 = vsub.f32 1.0, %v1255
      %v1257 = vmul.f32 %v1254, %v1256
      %v1258 = vadd.f32 %v1254, %v1257
      %vm1259 = vweird.f32 %v466
      %vm1260 = vweird.f32 %v1254
      %vm1261 = vmor %vm1259, %vm1260
      %v1262 = vsel %vm1261, %v1254, %v1258
      %v1263 = vand.u32 2147483647, %v466
      %vm1264 = vcmp.eq.f32.partialorder %v1263, 8.507059e+37
      %v1265 = vand.u32 %v466, 2147483648
      %v1266 = vor.u32 1.1754944e-38, %v1265
      %v1267 = vsel %vm1264, %v1266, %v1262
      %v1268 = vmul.f32 1.0, %v1267
      %v1269 = vrcp.pop %v467
      %v1270 = vmul.f32 %v467, %v1269
      %v1271 = vsub.f32 1.0, %v1270
      %v1272 = vmul.f32 %v1269, %v1271
      %v1273 = vadd.f32 %v1269, %v1272
      %vm1274 = vweird.f32 %v467
      %vm1275 = vweird.f32 %v1269
      %vm1276 = vmor %vm1274, %vm1275
      %v1277 = vsel %vm1276, %v1269, %v1273
      %v1278 = vand.u32 2147483647, %v467
      %vm1279 = vcmp.eq.f32.partialorder %v1278, 8.507059e+37
      %v1280 = vand.u32 %v467, 2147483648
      %v1281 = vor.u32 1.1754944e-38, %v1280
      %v1282 = vsel %vm1279, %v1281, %v1277
      %v1283 = vmul.f32 1.0, %v1282
      %v1284 = vrcp.pop %v468
      %v1285 = vmul.f32 %v468, %v1284
      %v1286 = vsub.f32 1.0, %v1285
      %v1287 = vmul.f32 %v1284, %v1286
      %v1288 = vadd.f32 %v1284, %v1287
      %vm1289 = vweird.f32 %v468
      %vm1290 = vweird.f32 %v1284
      %vm1291 = vmor %vm1289, %vm1290
      %v1292 = vsel %vm1291, %v1284, %v1288
      %v1293 = vand.u32 2147483647, %v468
      %vm1294 = vcmp.eq.f32.partialorder %v1293, 8.507059e+37
      %v1295 = vand.u32 %v468, 2147483648
      %v1296 = vor.u32 1.1754944e-38, %v1295
      %v1297 = vsel %vm1294, %v1296, %v1292
      %v1298 = vmul.f32 1.0, %v1297
      %v1299 = vrcp.pop %v469
      %v1300 = vmul.f32 %v469, %v1299
      %v1301 = vsub.f32 1.0, %v1300
      %v1302 = vmul.f32 %v1299, %v1301
      %v1303 = vadd.f32 %v1299, %v1302
      %vm1304 = vweird.f32 %v469
      %vm1305 = vweird.f32 %v1299
      %vm1306 = vmor %vm1304, %vm1305
      %v1307 = vsel %vm1306, %v1299, %v1303
      %v1308 = vand.u32 2147483647, %v469
      %vm1309 = vcmp.eq.f32.partialorder %v1308, 8.507059e+37
      %v1310 = vand.u32 %v469, 2147483648
      %v1311 = vor.u32 1.1754944e-38, %v1310
      %v1312 = vsel %vm1309, %v1311, %v1307
      %v1313 = vmul.f32 1.0, %v1312
      %v1314 = vrcp.pop %v470
      %v1315 = vmul.f32 %v470, %v1314
      %v1316 = vsub.f32 1.0, %v1315
      %v1317 = vmul.f32 %v1314, %v1316
      %v1318 = vadd.f32 %v1314, %v1317
      %vm1319 = vweird.f32 %v470
      %vm1320 = vweird.f32 %v1314
      %vm1321 = vmor %vm1319, %vm1320
      %v1322 = vsel %vm1321, %v1314, %v1318
      %v1323 = vand.u32 2147483647, %v470
      %vm1324 = vcmp.eq.f32.partialorder %v1323, 8.507059e+37
      %v1325 = vand.u32 %v470, 2147483648
      %v1326 = vor.u32 1.1754944e-38, %v1325
      %v1327 = vsel %vm1324, %v1326, %v1322
      %v1328 = vmul.f32 1.0, %v1327
      %v1329 = vrcp.pop %v471
      %v1330 = vmul.f32 %v471, %v1329
      %v1331 = vsub.f32 1.0, %v1330
      %v1332 = vmul.f32 %v1329, %v1331
      %v1333 = vadd.f32 %v1329, %v1332
      %vm1334 = vweird.f32 %v471
      %vm1335 = vweird.f32 %v1329
      %vm1336 = vmor %vm1334, %vm1335
      %v1337 = vsel %vm1336, %v1329, %v1333
      %v1338 = vand.u32 2147483647, %v471
      %vm1339 = vcmp.eq.f32.partialorder %v1338, 8.507059e+37
      %v1340 = vand.u32 %v471, 2147483648
      %v1341 = vor.u32 1.1754944e-38, %v1340
      %v1342 = vsel %vm1339, %v1341, %v1337
      %v1343 = vmul.f32 1.0, %v1342
      %v1344 = vrcp.pop %v472
      %v1345 = vmul.f32 %v472, %v1344
      %v1346 = vsub.f32 1.0, %v1345
      %v1347 = vmul.f32 %v1344, %v1346
      %v1348 = vadd.f32 %v1344, %v1347
      %vm1349 = vweird.f32 %v472
      %vm1350 = vweird.f32 %v1344
      %vm1351 = vmor %vm1349, %vm1350
      %v1352 = vsel %vm1351, %v1344, %v1348
      %v1353 = vand.u32 2147483647, %v472
      %vm1354 = vcmp.eq.f32.partialorder %v1353, 8.507059e+37
      %v1355 = vand.u32 %v472, 2147483648
      %v1356 = vor.u32 1.1754944e-38, %v1355
      %v1357 = vsel %vm1354, %v1356, %v1352
      %v1358 = vmul.f32 1.0, %v1357
      %v1359 = vrcp.pop %v473
      %v1360 = vmul.f32 %v473, %v1359
      %v1361 = vsub.f32 1.0, %v1360
      %v1362 = vmul.f32 %v1359, %v1361
      %v1363 = vadd.f32 %v1359, %v1362
      %vm1364 = vweird.f32 %v473
      %vm1365 = vweird.f32 %v1359
      %vm1366 = vmor %vm1364, %vm1365
      %v1367 = vsel %vm1366, %v1359, %v1363
      %v1368 = vand.u32 2147483647, %v473
      %vm1369 = vcmp.eq.f32.partialorder %v1368, 8.507059e+37
      %v1370 = vand.u32 %v473, 2147483648
      %v1371 = vor.u32 1.1754944e-38, %v1370
      %v1372 = vsel %vm1369, %v1371, %v1367
      %v1373 = vmul.f32 1.0, %v1372
      %v1374 = vld [vmem:[%s165] sm:$0xff]
      %v1375 = vld [vmem:[%s165 + $0x8] sm:$0xff]
      %v1376 = vld [vmem:[%s165 + $0x10] sm:$0xff]
      %v1377 = vld [vmem:[%s165 + $0x18] sm:$0xff]
      %v1378 = vld [vmem:[%s165 + $0x20] sm:$0xff]
      %v1379 = vld [vmem:[%s165 + $0x28] sm:$0xff]
      %v1380 = vld [vmem:[%s165 + $0x30] sm:$0xff]
      %v1381 = vld [vmem:[%s165 + $0x38] sm:$0xff]
      %v1382 = vld [vmem:[%s165 + $0x40] sm:$0xff]
      %v1383 = vld [vmem:[%s165 + $0x48] sm:$0xff]
      %v1384 = vld [vmem:[%s165 + $0x50] sm:$0xff]
      %v1385 = vld [vmem:[%s165 + $0x58] sm:$0xff]
      %v1386 = vld [vmem:[%s165 + $0x60] sm:$0xff]
      %v1387 = vld [vmem:[%s165 + $0x68] sm:$0xff]
      %v1388 = vld [vmem:[%s165 + $0x70] sm:$0xff]
      %v1389 = vld [vmem:[%s165 + $0x78] sm:$0xff]
      %v1390 = vld [vmem:[%s165 + $0x80] sm:$0xff]
      %v1391 = vld [vmem:[%s165 + $0x88] sm:$0xff]
      %v1392 = vld [vmem:[%s165 + $0x90] sm:$0xff]
      %v1393 = vld [vmem:[%s165 + $0x98] sm:$0xff]
      %v1394 = vld [vmem:[%s165 + $0xa0] sm:$0xff]
      %v1395 = vld [vmem:[%s165 + $0xa8] sm:$0xff]
      %v1396 = vld [vmem:[%s165 + $0xb0] sm:$0xff]
      %v1397 = vld [vmem:[%s165 + $0xb8] sm:$0xff]
      %v1398 = vld [vmem:[%s165 + $0xc0] sm:$0xff]
      %v1399 = vld [vmem:[%s165 + $0xc8] sm:$0xff]
      %v1400 = vld [vmem:[%s165 + $0xd0] sm:$0xff]
      %v1401 = vld [vmem:[%s165 + $0xd8] sm:$0xff]
      %v1402 = vld [vmem:[%s165 + $0xe0] sm:$0xff]
      %v1403 = vld [vmem:[%s165 + $0xe8] sm:$0xff]
      %v1404 = vld [vmem:[%s165 + $0xf0] sm:$0xff]
      %v1405 = vld [vmem:[%s165 + $0xf8] sm:$0xff]
      %v1406 = vld [vmem:[%s165 + $0x100] sm:$0xff]
      %v1407 = vld [vmem:[%s165 + $0x108] sm:$0xff]
      %v1408 = vld [vmem:[%s165 + $0x110] sm:$0xff]
      %v1409 = vld [vmem:[%s165 + $0x118] sm:$0xff]
      %v1410 = vld [vmem:[%s165 + $0x120] sm:$0xff]
      %v1411 = vld [vmem:[%s165 + $0x128] sm:$0xff]
      %v1412 = vld [vmem:[%s165 + $0x130] sm:$0xff]
      %v1413 = vld [vmem:[%s165 + $0x138] sm:$0xff]
      %v1414 = vld [vmem:[%s165 + $0x140] sm:$0xff]
      %v1415 = vld [vmem:[%s165 + $0x148] sm:$0xff]
      %v1416 = vld [vmem:[%s165 + $0x150] sm:$0xff]
      %v1417 = vld [vmem:[%s165 + $0x158] sm:$0xff]
      %v1418 = vld [vmem:[%s165 + $0x160] sm:$0xff]
      %v1419 = vld [vmem:[%s165 + $0x168] sm:$0xff]
      %v1420 = vld [vmem:[%s165 + $0x170] sm:$0xff]
      %v1421 = vld [vmem:[%s165 + $0x178] sm:$0xff]
      %v1422 = vld [vmem:[%s165 + $0x180] sm:$0xff]
      %v1423 = vld [vmem:[%s165 + $0x188] sm:$0xff]
      %v1424 = vld [vmem:[%s165 + $0x190] sm:$0xff]
      %v1425 = vld [vmem:[%s165 + $0x198] sm:$0xff]
      %v1426 = vld [vmem:[%s165 + $0x1a0] sm:$0xff]
      %v1427 = vld [vmem:[%s165 + $0x1a8] sm:$0xff]
      %v1428 = vld [vmem:[%s165 + $0x1b0] sm:$0xff]
      %v1429 = vld [vmem:[%s165 + $0x1b8] sm:$0xff]
      %v1430 = vld [vmem:[%s165 + $0x1c0] sm:$0xff]
      %v1431 = vld [vmem:[%s165 + $0x1c8] sm:$0xff]
      %v1432 = vld [vmem:[%s165 + $0x1d0] sm:$0xff]
      %v1433 = vld [vmem:[%s165 + $0x1d8] sm:$0xff]
      %v1434 = vld [vmem:[%s165 + $0x1e0] sm:$0xff]
      %v1435 = vld [vmem:[%s165 + $0x1e8] sm:$0xff]
      %v1436 = vld [vmem:[%s165 + $0x1f0] sm:$0xff]
      %v1437 = vld [vmem:[%s165 + $0x1f8] sm:$0xff]
      %v1438 = vld [vmem:[%s165 + $0x200] sm:$0xff]
      %v1439 = vld [vmem:[%s165 + $0x208] sm:$0xff]
      %v1440 = vld [vmem:[%s165 + $0x210] sm:$0xff]
      %v1441 = vld [vmem:[%s165 + $0x218] sm:$0xff]
      %v1442 = vld [vmem:[%s165 + $0x220] sm:$0xff]
      %v1443 = vld [vmem:[%s165 + $0x228] sm:$0xff]
      %v1444 = vld [vmem:[%s165 + $0x230] sm:$0xff]
      %v1445 = vld [vmem:[%s165 + $0x238] sm:$0xff]
      %v1446 = vld [vmem:[%s165 + $0x240] sm:$0xff]
      %v1447 = vld [vmem:[%s165 + $0x248] sm:$0xff]
      %v1448 = vld [vmem:[%s165 + $0x250] sm:$0xff]
      %v1449 = vld [vmem:[%s165 + $0x258] sm:$0xff]
      %v1450 = vld [vmem:[%s165 + $0x260] sm:$0xff]
      %v1451 = vld [vmem:[%s165 + $0x268] sm:$0xff]
      %v1452 = vld [vmem:[%s165 + $0x270] sm:$0xff]
      %v1453 = vld [vmem:[%s165 + $0x278] sm:$0xff]
      %v1454 = vld [vmem:[%s165 + $0x280] sm:$0xff]
      %v1455 = vld [vmem:[%s165 + $0x288] sm:$0xff]
      %v1456 = vld [vmem:[%s165 + $0x290] sm:$0xff]
      %v1457 = vld [vmem:[%s165 + $0x298] sm:$0xff]
      %v1458 = vld [vmem:[%s165 + $0x2a0] sm:$0xff]
      %v1459 = vld [vmem:[%s165 + $0x2a8] sm:$0xff]
      %v1460 = vld [vmem:[%s165 + $0x2b0] sm:$0xff]
      %v1461 = vld [vmem:[%s165 + $0x2b8] sm:$0xff]
      %v1462 = vld [vmem:[%s165 + $0x2c0] sm:$0xff]
      %v1463 = vld [vmem:[%s165 + $0x2c8] sm:$0xff]
      %v1464 = vld [vmem:[%s165 + $0x2d0] sm:$0xff]
      %v1465 = vld [vmem:[%s165 + $0x2d8] sm:$0xff]
      %v1466 = vld [vmem:[%s165 + $0x2e0] sm:$0xff]
      %v1467 = vld [vmem:[%s165 + $0x2e8] sm:$0xff]
      %v1468 = vld [vmem:[%s165 + $0x2f0] sm:$0xff]
      %v1469 = vld [vmem:[%s165 + $0x2f8] sm:$0xff]
      %v1470 = vld [vmem:[%s165 + $0x300] sm:$0xff]
      %v1471 = vld [vmem:[%s165 + $0x308] sm:$0xff]
      %v1472 = vld [vmem:[%s165 + $0x310] sm:$0xff]
      %v1473 = vld [vmem:[%s165 + $0x318] sm:$0xff]
      %v1474 = vld [vmem:[%s165 + $0x320] sm:$0xff]
      %v1475 = vld [vmem:[%s165 + $0x328] sm:$0xff]
      %v1476 = vld [vmem:[%s165 + $0x330] sm:$0xff]
      %v1477 = vld [vmem:[%s165 + $0x338] sm:$0xff]
      %v1478 = vld [vmem:[%s165 + $0x340] sm:$0xff]
      %v1479 = vld [vmem:[%s165 + $0x348] sm:$0xff]
      %v1480 = vld [vmem:[%s165 + $0x350] sm:$0xff]
      %v1481 = vld [vmem:[%s165 + $0x358] sm:$0xff]
      %v1482 = vld [vmem:[%s165 + $0x360] sm:$0xff]
      %v1483 = vld [vmem:[%s165 + $0x368] sm:$0xff]
      %v1484 = vld [vmem:[%s165 + $0x370] sm:$0xff]
      %v1485 = vld [vmem:[%s165 + $0x378] sm:$0xff]
      %v1486 = vld [vmem:[%s165 + $0x380] sm:$0xff]
      %v1487 = vld [vmem:[%s165 + $0x388] sm:$0xff]
      %v1488 = vld [vmem:[%s165 + $0x390] sm:$0xff]
      %v1489 = vld [vmem:[%s165 + $0x398] sm:$0xff]
      %v1490 = vld [vmem:[%s165 + $0x3a0] sm:$0xff]
      %v1491 = vld [vmem:[%s165 + $0x3a8] sm:$0xff]
      %v1492 = vld [vmem:[%s165 + $0x3b0] sm:$0xff]
      %v1493 = vld [vmem:[%s165 + $0x3b8] sm:$0xff]
      %1495 = vset.pattern.permute.xlu0 0
      %1496 = vperm.xlu0 %1495, %v488
      %v1497 = vpop.permute.xlu0 %1496
      %1500 = vset.pattern.permute.xlu0 0
      %1501 = vperm.xlu0 %1500, %v503
      %v1502 = vpop.permute.xlu0 %1501
      %1505 = vset.pattern.permute.xlu0 0
      %1506 = vperm.xlu0 %1505, %v518
      %v1507 = vpop.permute.xlu0 %1506
      %1510 = vset.pattern.permute.xlu0 0
      %1511 = vperm.xlu0 %1510, %v533
      %v1512 = vpop.permute.xlu0 %1511
      %1515 = vset.pattern.permute.xlu0 0
      %1516 = vperm.xlu0 %1515, %v548
      %v1517 = vpop.permute.xlu0 %1516
      %1520 = vset.pattern.permute.xlu0 0
      %1521 = vperm.xlu0 %1520, %v563
      %v1522 = vpop.permute.xlu0 %1521
      %1525 = vset.pattern.permute.xlu0 0
      %1526 = vperm.xlu0 %1525, %v578
      %v1527 = vpop.permute.xlu0 %1526
      %1530 = vset.pattern.permute.xlu0 0
      %1531 = vperm.xlu0 %1530, %v593
      %v1532 = vpop.permute.xlu0 %1531
      %1535 = vset.pattern.permute.xlu0 0
      %1536 = vperm.xlu0 %1535, %v608
      %v1537 = vpop.permute.xlu0 %1536
      %1540 = vset.pattern.permute.xlu0 0
      %1541 = vperm.xlu0 %1540, %v623
      %v1542 = vpop.permute.xlu0 %1541
      %1545 = vset.pattern.permute.xlu0 0
      %1546 = vperm.xlu0 %1545, %v638
      %v1547 = vpop.permute.xlu0 %1546
      %1550 = vset.pattern.permute.xlu0 0
      %1551 = vperm.xlu0 %1550, %v653
      %v1552 = vpop.permute.xlu0 %1551
      %1555 = vset.pattern.permute.xlu0 0
      %1556 = vperm.xlu0 %1555, %v668
      %v1557 = vpop.permute.xlu0 %1556
      %1560 = vset.pattern.permute.xlu0 0
      %1561 = vperm.xlu0 %1560, %v683
      %v1562 = vpop.permute.xlu0 %1561
      %1565 = vset.pattern.permute.xlu0 0
      %1566 = vperm.xlu0 %1565, %v698
      %v1567 = vpop.permute.xlu0 %1566
      %1570 = vset.pattern.permute.xlu0 0
      %1571 = vperm.xlu0 %1570, %v713
      %v1572 = vpop.permute.xlu0 %1571
      %1575 = vset.pattern.permute.xlu0 0
      %1576 = vperm.xlu0 %1575, %v728
      %v1577 = vpop.permute.xlu0 %1576
      %1580 = vset.pattern.permute.xlu0 0
      %1581 = vperm.xlu0 %1580, %v743
      %v1582 = vpop.permute.xlu0 %1581
      %1585 = vset.pattern.permute.xlu0 0
      %1586 = vperm.xlu0 %1585, %v758
      %v1587 = vpop.permute.xlu0 %1586
      %1590 = vset.pattern.permute.xlu0 0
      %1591 = vperm.xlu0 %1590, %v773
      %v1592 = vpop.permute.xlu0 %1591
      %1595 = vset.pattern.permute.xlu0 0
      %1596 = vperm.xlu0 %1595, %v788
      %v1597 = vpop.permute.xlu0 %1596
      %1600 = vset.pattern.permute.xlu0 0
      %1601 = vperm.xlu0 %1600, %v803
      %v1602 = vpop.permute.xlu0 %1601
      %1605 = vset.pattern.permute.xlu0 0
      %1606 = vperm.xlu0 %1605, %v818
      %v1607 = vpop.permute.xlu0 %1606
      %1610 = vset.pattern.permute.xlu0 0
      %1611 = vperm.xlu0 %1610, %v833
      %v1612 = vpop.permute.xlu0 %1611
      %1615 = vset.pattern.permute.xlu0 0
      %1616 = vperm.xlu0 %1615, %v848
      %v1617 = vpop.permute.xlu0 %1616
      %1620 = vset.pattern.permute.xlu0 0
      %1621 = vperm.xlu0 %1620, %v863
      %v1622 = vpop.permute.xlu0 %1621
      %1625 = vset.pattern.permute.xlu0 0
      %1626 = vperm.xlu0 %1625, %v878
      %v1627 = vpop.permute.xlu0 %1626
      %1630 = vset.pattern.permute.xlu0 0
      %1631 = vperm.xlu0 %1630, %v893
      %v1632 = vpop.permute.xlu0 %1631
      %1635 = vset.pattern.permute.xlu0 0
      %1636 = vperm.xlu0 %1635, %v908
      %v1637 = vpop.permute.xlu0 %1636
      %1640 = vset.pattern.permute.xlu0 0
      %1641 = vperm.xlu0 %1640, %v923
      %v1642 = vpop.permute.xlu0 %1641
      %1645 = vset.pattern.permute.xlu0 0
      %1646 = vperm.xlu0 %1645, %v938
      %v1647 = vpop.permute.xlu0 %1646
      %1650 = vset.pattern.permute.xlu0 0
      %1651 = vperm.xlu0 %1650, %v953
      %v1652 = vpop.permute.xlu0 %1651
      %1655 = vset.pattern.permute.xlu0 0
      %1656 = vperm.xlu0 %1655, %v968
      %v1657 = vpop.permute.xlu0 %1656
      %1660 = vset.pattern.permute.xlu0 0
      %1661 = vperm.xlu0 %1660, %v983
      %v1662 = vpop.permute.xlu0 %1661
      %1665 = vset.pattern.permute.xlu0 0
      %1666 = vperm.xlu0 %1665, %v998
      %v1667 = vpop.permute.xlu0 %1666
      %1670 = vset.pattern.permute.xlu0 0
      %1671 = vperm.xlu0 %1670, %v1013
      %v1672 = vpop.permute.xlu0 %1671
      %1675 = vset.pattern.permute.xlu0 0
      %1676 = vperm.xlu0 %1675, %v1028
      %v1677 = vpop.permute.xlu0 %1676
      %1680 = vset.pattern.permute.xlu0 0
      %1681 = vperm.xlu0 %1680, %v1043
      %v1682 = vpop.permute.xlu0 %1681
      %1685 = vset.pattern.permute.xlu0 0
      %1686 = vperm.xlu0 %1685, %v1058
      %v1687 = vpop.permute.xlu0 %1686
      %1690 = vset.pattern.permute.xlu0 0
      %1691 = vperm.xlu0 %1690, %v1073
      %v1692 = vpop.permute.xlu0 %1691
      %1695 = vset.pattern.permute.xlu0 0
      %1696 = vperm.xlu0 %1695, %v1088
      %v1697 = vpop.permute.xlu0 %1696
      %1700 = vset.pattern.permute.xlu0 0
      %1701 = vperm.xlu0 %1700, %v1103
      %v1702 = vpop.permute.xlu0 %1701
      %1705 = vset.pattern.permute.xlu0 0
      %1706 = vperm.xlu0 %1705, %v1118
      %v1707 = vpop.permute.xlu0 %1706
      %1710 = vset.pattern.permute.xlu0 0
      %1711 = vperm.xlu0 %1710, %v1133
      %v1712 = vpop.permute.xlu0 %1711
      %1715 = vset.pattern.permute.xlu0 0
      %1716 = vperm.xlu0 %1715, %v1148
      %v1717 = vpop.permute.xlu0 %1716
      %1720 = vset.pattern.permute.xlu0 0
      %1721 = vperm.xlu0 %1720, %v1163
      %v1722 = vpop.permute.xlu0 %1721
      %1725 = vset.pattern.permute.xlu0 0
      %1726 = vperm.xlu0 %1725, %v1178
      %v1727 = vpop.permute.xlu0 %1726
      %1730 = vset.pattern.permute.xlu0 0
      %1731 = vperm.xlu0 %1730, %v1193
      %v1732 = vpop.permute.xlu0 %1731
      %1735 = vset.pattern.permute.xlu0 0
      %1736 = vperm.xlu0 %1735, %v1208
      %v1737 = vpop.permute.xlu0 %1736
      %1740 = vset.pattern.permute.xlu0 0
      %1741 = vperm.xlu0 %1740, %v1223
      %v1742 = vpop.permute.xlu0 %1741
      %1745 = vset.pattern.permute.xlu0 0
      %1746 = vperm.xlu0 %1745, %v1238
      %v1747 = vpop.permute.xlu0 %1746
      %1750 = vset.pattern.permute.xlu0 0
      %1751 = vperm.xlu0 %1750, %v1253
      %v1752 = vpop.permute.xlu0 %1751
      %1755 = vset.pattern.permute.xlu0 0
      %1756 = vperm.xlu0 %1755, %v1268
      %v1757 = vpop.permute.xlu0 %1756
      %1760 = vset.pattern.permute.xlu0 0
      %1761 = vperm.xlu0 %1760, %v1283
      %v1762 = vpop.permute.xlu0 %1761
      %1765 = vset.pattern.permute.xlu0 0
      %1766 = vperm.xlu0 %1765, %v1298
      %v1767 = vpop.permute.xlu0 %1766
      %1770 = vset.pattern.permute.xlu0 0
      %1771 = vperm.xlu0 %1770, %v1313
      %v1772 = vpop.permute.xlu0 %1771
      %1775 = vset.pattern.permute.xlu0 0
      %1776 = vperm.xlu0 %1775, %v1328
      %v1777 = vpop.permute.xlu0 %1776
      %1780 = vset.pattern.permute.xlu0 0
      %1781 = vperm.xlu0 %1780, %v1343
      %v1782 = vpop.permute.xlu0 %1781
      %1785 = vset.pattern.permute.xlu0 0
      %1786 = vperm.xlu0 %1785, %v1358
      %v1787 = vpop.permute.xlu0 %1786
      %1790 = vset.pattern.permute.xlu0 0
      %1791 = vperm.xlu0 %1790, %v1373
      %v1792 = vpop.permute.xlu0 %1791
      %v1794 = vmul.f32 %v1497, %v1374
      %v1795 = vmul.f32 %v1497, %v1375
      %v1796 = vmul.f32 %v1502, %v1376
      %v1797 = vmul.f32 %v1502, %v1377
      %v1798 = vmul.f32 %v1507, %v1378
      %v1799 = vmul.f32 %v1507, %v1379
      %v1800 = vmul.f32 %v1512, %v1380
      %v1801 = vmul.f32 %v1512, %v1381
      %v1802 = vmul.f32 %v1517, %v1382
      %v1803 = vmul.f32 %v1517, %v1383
      %v1804 = vmul.f32 %v1522, %v1384
      %v1805 = vmul.f32 %v1522, %v1385
      %v1806 = vmul.f32 %v1527, %v1386
      %v1807 = vmul.f32 %v1527, %v1387
      %v1808 = vmul.f32 %v1532, %v1388
      %v1809 = vmul.f32 %v1532, %v1389
      %v1810 = vmul.f32 %v1537, %v1390
      %v1811 = vmul.f32 %v1537, %v1391
      %v1812 = vmul.f32 %v1542, %v1392
      %v1813 = vmul.f32 %v1542, %v1393
      %v1814 = vmul.f32 %v1547, %v1394
      %v1815 = vmul.f32 %v1547, %v1395
      %v1816 = vmul.f32 %v1552, %v1396
      %v1817 = vmul.f32 %v1552, %v1397
      %v1818 = vmul.f32 %v1557, %v1398
      %v1819 = vmul.f32 %v1557, %v1399
      %v1820 = vmul.f32 %v1562, %v1400
      %v1821 = vmul.f32 %v1562, %v1401
      %v1822 = vmul.f32 %v1567, %v1402
      %v1823 = vmul.f32 %v1567, %v1403
      %v1824 = vmul.f32 %v1572, %v1404
      %v1825 = vmul.f32 %v1572, %v1405
      %v1826 = vmul.f32 %v1577, %v1406
      %v1827 = vmul.f32 %v1577, %v1407
      %v1828 = vmul.f32 %v1582, %v1408
      %v1829 = vmul.f32 %v1582, %v1409
      %v1830 = vmul.f32 %v1587, %v1410
      %v1831 = vmul.f32 %v1587, %v1411
      %v1832 = vmul.f32 %v1592, %v1412
      %v1833 = vmul.f32 %v1592, %v1413
      %v1834 = vmul.f32 %v1597, %v1414
      %v1835 = vmul.f32 %v1597, %v1415
      %v1836 = vmul.f32 %v1602, %v1416
      %v1837 = vmul.f32 %v1602, %v1417
      %v1838 = vmul.f32 %v1607, %v1418
      %v1839 = vmul.f32 %v1607, %v1419
      %v1840 = vmul.f32 %v1612, %v1420
      %v1841 = vmul.f32 %v1612, %v1421
      %v1842 = vmul.f32 %v1617, %v1422
      %v1843 = vmul.f32 %v1617, %v1423
      %v1844 = vmul.f32 %v1622, %v1424
      %v1845 = vmul.f32 %v1622, %v1425
      %v1846 = vmul.f32 %v1627, %v1426
      %v1847 = vmul.f32 %v1627, %v1427
      %v1848 = vmul.f32 %v1632, %v1428
      %v1849 = vmul.f32 %v1632, %v1429
      %v1850 = vmul.f32 %v1637, %v1430
      %v1851 = vmul.f32 %v1637, %v1431
      %v1852 = vmul.f32 %v1642, %v1432
      %v1853 = vmul.f32 %v1642, %v1433
      %v1854 = vmul.f32 %v1647, %v1434
      %v1855 = vmul.f32 %v1647, %v1435
      %v1856 = vmul.f32 %v1652, %v1436
      %v1857 = vmul.f32 %v1652, %v1437
      %v1858 = vmul.f32 %v1657, %v1438
      %v1859 = vmul.f32 %v1657, %v1439
      %v1860 = vmul.f32 %v1662, %v1440
      %v1861 = vmul.f32 %v1662, %v1441
      %v1862 = vmul.f32 %v1667, %v1442
      %v1863 = vmul.f32 %v1667, %v1443
      %v1864 = vmul.f32 %v1672, %v1444
      %v1865 = vmul.f32 %v1672, %v1445
      %v1866 = vmul.f32 %v1677, %v1446
      %v1867 = vmul.f32 %v1677, %v1447
      %v1868 = vmul.f32 %v1682, %v1448
      %v1869 = vmul.f32 %v1682, %v1449
      %v1870 = vmul.f32 %v1687, %v1450
      %v1871 = vmul.f32 %v1687, %v1451
      %v1872 = vmul.f32 %v1692, %v1452
      %v1873 = vmul.f32 %v1692, %v1453
      %v1874 = vmul.f32 %v1697, %v1454
      %v1875 = vmul.f32 %v1697, %v1455
      %v1876 = vmul.f32 %v1702, %v1456
      %v1877 = vmul.f32 %v1702, %v1457
      %v1878 = vmul.f32 %v1707, %v1458
      %v1879 = vmul.f32 %v1707, %v1459
      %v1880 = vmul.f32 %v1712, %v1460
      %v1881 = vmul.f32 %v1712, %v1461
      %v1882 = vmul.f32 %v1717, %v1462
      %v1883 = vmul.f32 %v1717, %v1463
      %v1884 = vmul.f32 %v1722, %v1464
      %v1885 = vmul.f32 %v1722, %v1465
      %v1886 = vmul.f32 %v1727, %v1466
      %v1887 = vmul.f32 %v1727, %v1467
      %v1888 = vmul.f32 %v1732, %v1468
      %v1889 = vmul.f32 %v1732, %v1469
      %v1890 = vmul.f32 %v1737, %v1470
      %v1891 = vmul.f32 %v1737, %v1471
      %v1892 = vmul.f32 %v1742, %v1472
      %v1893 = vmul.f32 %v1742, %v1473
      %v1894 = vmul.f32 %v1747, %v1474
      %v1895 = vmul.f32 %v1747, %v1475
      %v1896 = vmul.f32 %v1752, %v1476
      %v1897 = vmul.f32 %v1752, %v1477
      %v1898 = vmul.f32 %v1757, %v1478
      %v1899 = vmul.f32 %v1757, %v1479
      %v1900 = vmul.f32 %v1762, %v1480
      %v1901 = vmul.f32 %v1762, %v1481
      %v1902 = vmul.f32 %v1767, %v1482
      %v1903 = vmul.f32 %v1767, %v1483
      %v1904 = vmul.f32 %v1772, %v1484
      %v1905 = vmul.f32 %v1772, %v1485
      %v1906 = vmul.f32 %v1777, %v1486
      %v1907 = vmul.f32 %v1777, %v1487
      %v1908 = vmul.f32 %v1782, %v1488
      %v1909 = vmul.f32 %v1782, %v1489
      %v1910 = vmul.f32 %v1787, %v1490
      %v1911 = vmul.f32 %v1787, %v1491
      %v1912 = vmul.f32 %v1792, %v1492
      %v1913 = vmul.f32 %v1792, %v1493
      %1914 = vst [vmem:[%s172] sm:$0xff] %v1794
      %vm1915 = vcmask 556032
      %1916 = vst.msk [vmem:[%s172 + $0x8] sm:$0xff] %vm1915, %v1795
      %1917 = vst [vmem:[%s172 + $0x10] sm:$0xff] %v1796
      %1918 = vst.msk [vmem:[%s172 + $0x18] sm:$0xff] %vm1915, %v1797
      %1919 = vst [vmem:[%s172 + $0x20] sm:$0xff] %v1798
      %1920 = vst.msk [vmem:[%s172 + $0x28] sm:$0xff] %vm1915, %v1799
      %1921 = vst [vmem:[%s172 + $0x30] sm:$0xff] %v1800
      %1922 = vst.msk [vmem:[%s172 + $0x38] sm:$0xff] %vm1915, %v1801
      %1923 = vst [vmem:[%s172 + $0x40] sm:$0xff] %v1802
      %1924 = vst.msk [vmem:[%s172 + $0x48] sm:$0xff] %vm1915, %v1803
      %1925 = vst [vmem:[%s172 + $0x50] sm:$0xff] %v1804
      %1926 = vst.msk [vmem:[%s172 + $0x58] sm:$0xff] %vm1915, %v1805
      %1927 = vst [vmem:[%s172 + $0x60] sm:$0xff] %v1806
      %1928 = vst.msk [vmem:[%s172 + $0x68] sm:$0xff] %vm1915, %v1807
      %1929 = vst [vmem:[%s172 + $0x70] sm:$0xff] %v1808
      %1930 = vst.msk [vmem:[%s172 + $0x78] sm:$0xff] %vm1915, %v1809
      %1931 = vst [vmem:[%s172 + $0x80] sm:$0xff] %v1810
      %1932 = vst.msk [vmem:[%s172 + $0x88] sm:$0xff] %vm1915, %v1811
      %1933 = vst [vmem:[%s172 + $0x90] sm:$0xff] %v1812
      %1934 = vst.msk [vmem:[%s172 + $0x98] sm:$0xff] %vm1915, %v1813
      %1935 = vst [vmem:[%s172 + $0xa0] sm:$0xff] %v1814
      %1936 = vst.msk [vmem:[%s172 + $0xa8] sm:$0xff] %vm1915, %v1815
      %1937 = vst [vmem:[%s172 + $0xb0] sm:$0xff] %v1816
      %1938 = vst.msk [vmem:[%s172 + $0xb8] sm:$0xff] %vm1915, %v1817
      %1939 = vst [vmem:[%s172 + $0xc0] sm:$0xff] %v1818
      %1940 = vst.msk [vmem:[%s172 + $0xc8] sm:$0xff] %vm1915, %v1819
      %1941 = vst [vmem:[%s172 + $0xd0] sm:$0xff] %v1820
      %1942 = vst.msk [vmem:[%s172 + $0xd8] sm:$0xff] %vm1915, %v1821
      %1943 = vst [vmem:[%s172 + $0xe0] sm:$0xff] %v1822
      %1944 = vst.msk [vmem:[%s172 + $0xe8] sm:$0xff] %vm1915, %v1823
      %1945 = vst [vmem:[%s172 + $0xf0] sm:$0xff] %v1824
      %1946 = vst.msk [vmem:[%s172 + $0xf8] sm:$0xff] %vm1915, %v1825
      %1947 = vst [vmem:[%s172 + $0x100] sm:$0xff] %v1826
      %1948 = vst.msk [vmem:[%s172 + $0x108] sm:$0xff] %vm1915, %v1827
      %1949 = vst [vmem:[%s172 + $0x110] sm:$0xff] %v1828
      %1950 = vst.msk [vmem:[%s172 + $0x118] sm:$0xff] %vm1915, %v1829
      %1951 = vst [vmem:[%s172 + $0x120] sm:$0xff] %v1830
      %1952 = vst.msk [vmem:[%s172 + $0x128] sm:$0xff] %vm1915, %v1831
      %1953 = vst [vmem:[%s172 + $0x130] sm:$0xff] %v1832
      %1954 = vst.msk [vmem:[%s172 + $0x138] sm:$0xff] %vm1915, %v1833
      %1955 = vst [vmem:[%s172 + $0x140] sm:$0xff] %v1834
      %1956 = vst.msk [vmem:[%s172 + $0x148] sm:$0xff] %vm1915, %v1835
      %1957 = vst [vmem:[%s172 + $0x150] sm:$0xff] %v1836
      %1958 = vst.msk [vmem:[%s172 + $0x158] sm:$0xff] %vm1915, %v1837
      %1959 = vst [vmem:[%s172 + $0x160] sm:$0xff] %v1838
      %1960 = vst.msk [vmem:[%s172 + $0x168] sm:$0xff] %vm1915, %v1839
      %1961 = vst [vmem:[%s172 + $0x170] sm:$0xff] %v1840
      %1962 = vst.msk [vmem:[%s172 + $0x178] sm:$0xff] %vm1915, %v1841
      %1963 = vst [vmem:[%s172 + $0x180] sm:$0xff] %v1842
      %1964 = vst.msk [vmem:[%s172 + $0x188] sm:$0xff] %vm1915, %v1843
      %1965 = vst [vmem:[%s172 + $0x190] sm:$0xff] %v1844
      %1966 = vst.msk [vmem:[%s172 + $0x198] sm:$0xff] %vm1915, %v1845
      %1967 = vst [vmem:[%s172 + $0x1a0] sm:$0xff] %v1846
      %1968 = vst.msk [vmem:[%s172 + $0x1a8] sm:$0xff] %vm1915, %v1847
      %1969 = vst [vmem:[%s172 + $0x1b0] sm:$0xff] %v1848
      %1970 = vst.msk [vmem:[%s172 + $0x1b8] sm:$0xff] %vm1915, %v1849
      %1971 = vst [vmem:[%s172 + $0x1c0] sm:$0xff] %v1850
      %1972 = vst.msk [vmem:[%s172 + $0x1c8] sm:$0xff] %vm1915, %v1851
      %1973 = vst [vmem:[%s172 + $0x1d0] sm:$0xff] %v1852
      %1974 = vst.msk [vmem:[%s172 + $0x1d8] sm:$0xff] %vm1915, %v1853
      %1975 = vst [vmem:[%s172 + $0x1e0] sm:$0xff] %v1854
      %1976 = vst.msk [vmem:[%s172 + $0x1e8] sm:$0xff] %vm1915, %v1855
      %1977 = vst [vmem:[%s172 + $0x1f0] sm:$0xff] %v1856
      %1978 = vst.msk [vmem:[%s172 + $0x1f8] sm:$0xff] %vm1915, %v1857
      %1979 = vst [vmem:[%s172 + $0x200] sm:$0xff] %v1858
      %1980 = vst.msk [vmem:[%s172 + $0x208] sm:$0xff] %vm1915, %v1859
      %1981 = vst [vmem:[%s172 + $0x210] sm:$0xff] %v1860
      %1982 = vst.msk [vmem:[%s172 + $0x218] sm:$0xff] %vm1915, %v1861
      %1983 = vst [vmem:[%s172 + $0x220] sm:$0xff] %v1862
      %1984 = vst.msk [vmem:[%s172 + $0x228] sm:$0xff] %vm1915, %v1863
      %1985 = vst [vmem:[%s172 + $0x230] sm:$0xff] %v1864
      %1986 = vst.msk [vmem:[%s172 + $0x238] sm:$0xff] %vm1915, %v1865
      %1987 = vst [vmem:[%s172 + $0x240] sm:$0xff] %v1866
      %1988 = vst.msk [vmem:[%s172 + $0x248] sm:$0xff] %vm1915, %v1867
      %1989 = vst [vmem:[%s172 + $0x250] sm:$0xff] %v1868
      %1990 = vst.msk [vmem:[%s172 + $0x258] sm:$0xff] %vm1915, %v1869
      %1991 = vst [vmem:[%s172 + $0x260] sm:$0xff] %v1870
      %1992 = vst.msk [vmem:[%s172 + $0x268] sm:$0xff] %vm1915, %v1871
      %1993 = vst [vmem:[%s172 + $0x270] sm:$0xff] %v1872
      %1994 = vst.msk [vmem:[%s172 + $0x278] sm:$0xff] %vm1915, %v1873
      %1995 = vst [vmem:[%s172 + $0x280] sm:$0xff] %v1874
      %1996 = vst.msk [vmem:[%s172 + $0x288] sm:$0xff] %vm1915, %v1875
      %1997 = vst [vmem:[%s172 + $0x290] sm:$0xff] %v1876
      %1998 = vst.msk [vmem:[%s172 + $0x298] sm:$0xff] %vm1915, %v1877
      %1999 = vst [vmem:[%s172 + $0x2a0] sm:$0xff] %v1878
      %2000 = vst.msk [vmem:[%s172 + $0x2a8] sm:$0xff] %vm1915, %v1879
      %2001 = vst [vmem:[%s172 + $0x2b0] sm:$0xff] %v1880
      %2002 = vst.msk [vmem:[%s172 + $0x2b8] sm:$0xff] %vm1915, %v1881
      %2003 = vst [vmem:[%s172 + $0x2c0] sm:$0xff] %v1882
      %2004 = vst.msk [vmem:[%s172 + $0x2c8] sm:$0xff] %vm1915, %v1883
      %2005 = vst [vmem:[%s172 + $0x2d0] sm:$0xff] %v1884
      %2006 = vst.msk [vmem:[%s172 + $0x2d8] sm:$0xff] %vm1915, %v1885
      %2007 = vst [vmem:[%s172 + $0x2e0] sm:$0xff] %v1886
      %2008 = vst.msk [vmem:[%s172 + $0x2e8] sm:$0xff] %vm1915, %v1887
      %2009 = vst [vmem:[%s172 + $0x2f0] sm:$0xff] %v1888
      %2010 = vst.msk [vmem:[%s172 + $0x2f8] sm:$0xff] %vm1915, %v1889
      %2011 = vst [vmem:[%s172 + $0x300] sm:$0xff] %v1890
      %2012 = vst.msk [vmem:[%s172 + $0x308] sm:$0xff] %vm1915, %v1891
      %2013 = vst [vmem:[%s172 + $0x310] sm:$0xff] %v1892
      %2014 = vst.msk [vmem:[%s172 + $0x318] sm:$0xff] %vm1915, %v1893
      %2015 = vst [vmem:[%s172 + $0x320] sm:$0xff] %v1894
      %2016 = vst.msk [vmem:[%s172 + $0x328] sm:$0xff] %vm1915, %v1895
      %2017 = vst [vmem:[%s172 + $0x330] sm:$0xff] %v1896
      %2018 = vst.msk [vmem:[%s172 + $0x338] sm:$0xff] %vm1915, %v1897
      %2019 = vst [vmem:[%s172 + $0x340] sm:$0xff] %v1898
      %2020 = vst.msk [vmem:[%s172 + $0x348] sm:$0xff] %vm1915, %v1899
      %2021 = vst [vmem:[%s172 + $0x350] sm:$0xff] %v1900
      %2022 = vst.msk [vmem:[%s172 + $0x358] sm:$0xff] %vm1915, %v1901
      %2023 = vst [vmem:[%s172 + $0x360] sm:$0xff] %v1902
      %2024 = vst.msk [vmem:[%s172 + $0x368] sm:$0xff] %vm1915, %v1903
      %2025 = vst [vmem:[%s172 + $0x370] sm:$0xff] %v1904
      %2026 = vst.msk [vmem:[%s172 + $0x378] sm:$0xff] %vm1915, %v1905
      %2027 = vst [vmem:[%s172 + $0x380] sm:$0xff] %v1906
      %2028 = vst.msk [vmem:[%s172 + $0x388] sm:$0xff] %vm1915, %v1907
      %2029 = vst [vmem:[%s172 + $0x390] sm:$0xff] %v1908
      %2030 = vst.msk [vmem:[%s172 + $0x398] sm:$0xff] %vm1915, %v1909
      %2031 = vst [vmem:[%s172 + $0x3a0] sm:$0xff] %v1910
      %2032 = vst.msk [vmem:[%s172 + $0x3a8] sm:$0xff] %vm1915, %v1911
      %2033 = vst [vmem:[%s172 + $0x3b0] sm:$0xff] %v1912
      %2034 = vst.msk [vmem:[%s172 + $0x3b8] sm:$0xff] %vm1915, %v1913
      %s2035 = smul.u32 60, %s13
      %p2036 = scmp.lt.s32.totalorder %s2035, 119
      %s2037 = scalar_select %p2036, %s2035, 119
      %s2038 = smul.addr %s2037, 2
      %s2039 = smul.addr %s2038, 8
      %s2040 = scalar_lea.vmem %s2, %s2039
      // Predicated region
      $region29: #{tpu_custom_call.1} parent=27 // pred_check
        %p2041 = pneg %p83
      $region30: #{tpu_custom_call.1} parent=27 // pred_check_branch
        %2043 = sbr.rel (%p2041) target = $region32
      $region31: #{tpu_custom_call.1} parent=27 // pred_region
        %s2044 = smul.u32 60, %s13
      $region32: #{tpu_custom_call.1} parent=27 // pred_fallthru
        _
    $region28: #{tpu_custom_call.1} parent=5 // pred_fallthru
      _
    %p2045 = scmp.le.s32.totalorder 2, %s8
    // Predicated region
    $region33: #{tpu_custom_call.1} parent=5 // pred_check
      %p2046 = pneg %p2045
    $region34: #{tpu_custom_call.1} parent=5 // pred_check_branch
      %2048 = sbr.rel (%p2046) target = $region36
    $region35: #{tpu_custom_call.1} parent=5 // pred_region
      %s2049 = ssub.s32 %s8, 2
      // Predicated region
      $region37: #{tpu_custom_call.1} parent=35 // pred_check
        %p2050 = pneg %p89
      $region38: #{tpu_custom_call.1} parent=35 // pred_check_branch
        %2052 = sbr.rel (%p2050) target = $region40
      $region39: #{tpu_custom_call.1} parent=35 // pred_region
        %s2053 = smul.u32 60, %s14
        %p2054 = scmp.lt.s32.totalorder %s2053, 119
        %s2055 = scalar_select %p2054, %s2053, 119
        %s2056 = smul.addr %s2055, 2
        %s2057 = smul.addr %s2056, 8
        %s2058 = scalar_lea.vmem %s2, %s2057
      $region40: #{tpu_custom_call.1} parent=35 // pred_fallthru
        _
    $region36: #{tpu_custom_call.1} parent=5 // pred_fallthru
      _
  $region6: #{tpu_custom_call.1} parent=0 // loop_footer
    %s12 = sadd.s32 1, %s8
  $region7: #{tpu_custom_call.1} parent=0 // loop_footer_branch
    %7 = sbr.rel target = $region3
  $region8: #{tpu_custom_call.1} parent=0 // loop_exit
    _

</llo_original>
